<compile_context>
chip_gen: v7x
topology: tpu7x:2x2x1
jax: 0.10.0
libtpu: 0.0.40
codegen_flags: <defaults>
</compile_context>

<pallas_src>
import math

import jax
import jax.numpy as jnp
import numpy as np
from jax import lax
from jax.experimental import pallas as pl
from jax.experimental.pallas import tpu as pltpu

# ---- module-consistent config ---------------------------------------------
D_MODEL = 32
HEADS = 4
D_HEAD = D_MODEL // HEADS
BATCH = 2
SEQ = 8
REL = 2 * SEQ - 1          # pos_emb length (2 * seq_len - 1)
DIM_SCALE = math.sqrt(D_MODEL)


# ---------------------------------------------------------------------------
# Fused kernel (single invocation, everything resident in VMEM).
#   qkv   : [B*S, 3D]   packed [query | key | value]
#   pe    : [B*Rp, D]   pos_emb padded to Rp=2S rows per batch
#   wqkv  : [3D, 3D]    block-diag(wq, wk, wv)              (bf16)
#   bqkv  : [B*S, 3D]   pre-broadcast [bq | bk | bv]
#   wp    : [D, D]      pos projection                      (bf16)
#   uvb   : [B*S, 2D]   pre-broadcast [u_flat | v_flat]
#   hmkv  : [H*B*S, D]  head-block mask for K/V rows (rows ordered (h,b,j))
#   hmp   : [H*B*Rp, D] head-block mask for P rows  (rows ordered (h,b,r))
#   shift : [H*B*Rp, S*H*B*S]  relative-shift one-hot       (bf16, exact)
#   grp   : [H*B*S, H*B*S]     (head,batch) group indicator (bf16, exact)
#   bmask : [B*S, H*B*S]       row-batch == column-batch indicator
#   wo,bo : output projection (bo pre-broadcast to [B*S, D])
#   out   : [B*S, D + 3*H*B*S] = [final | content | pos | attn]
# Cross-batch lanes of content/pos hold garbage (masked after exp, dropped by
# the wrapper); cross-batch attn lanes are exactly zero.
# ---------------------------------------------------------------------------
def _relattxl_fused_kernel(qkv_ref, pe_ref, wqkv_ref, bqkv_ref, wp_ref,
                           uvb_ref, hmkv_ref, hmp_ref, shift_ref, grp_ref,
                           bmask_ref, wo_ref, bo_ref, out_ref):
    f32 = jnp.float32
    bf16 = jnp.bfloat16

    BS = qkv_ref.shape[0]            # B * S
    D = qkv_ref.shape[1] // 3        # d_model
    HBS = grp_ref.shape[0]           # H * B * S  (key-slot lanes)
    H = HBS // BS
    S = shift_ref.shape[1] // HBS
    inv_scale = 1.0 / math.sqrt(D)

    def mm(a, b):                    # bf16 MXU matmul, f32 accumulate
        return jnp.dot(a.astype(bf16), b.astype(bf16),
                       preferred_element_type=f32)

    def mm_t(a, b):                  # contract last dim of a with last dim of b
        return lax.dot_general(a.astype(bf16), b.astype(bf16),
                               (((1,), (1,)), ((), ())),
                               preferred_element_type=f32)

    # --- fused q/k/v projection (block-diag weights, pre-broadcast bias) -----
    qkv = mm(qkv_ref[...], wqkv_ref[...]) + bqkv_ref[...]          # [BS, 3D]
    q2d = qkv[:, 0:D]
    k2d = qkv[:, D:2 * D]
    v2d = qkv[:, 2 * D:3 * D]
    p2d = mm(pe_ref[...], wp_ref[...])                             # [B*Rp, D]

    qu = q2d + uvb_ref[:, 0:D]                                     # + u_bias
    qv = q2d + uvb_ref[:, D:2 * D]                                 # + v_bias

    # --- head-replicated, head-block-masked K / V / P operands ---------------
    # key-slot rows ordered (h, b, j): this defines the lane layout of every
    # score-shaped tensor below.
    k_bd = jnp.concatenate([k2d] * H, axis=0) * hmkv_ref[...]      # [HBS, D]
    v_bd = jnp.concatenate([v2d] * H, axis=0) * hmkv_ref[...]      # [HBS, D]
    p_bd = jnp.concatenate([p2d] * H, axis=0) * hmp_ref[...]       # [H*B*Rp, D]

    # --- raw scores -----------------------------------------------------------
    content = mm_t(qu, k_bd)                                       # [BS, HBS]
    pos_raw = mm_t(qv, p_bd)                                       # [BS, H*B*Rp]

    # --- relative shift: one matmul + depth-3 masked tree (no serial chain) --
    p_all = mm(pos_raw, shift_ref[...])                            # [BS, S*HBS]
    rid = lax.broadcasted_iota(jnp.int32, (BS, 1), 0) % S          # row's i
    blocks = [p_all[:, i * HBS:(i + 1) * HBS] * (rid == i).astype(f32)
              for i in range(S)]
    while len(blocks) > 1:                                         # balanced tree
        nxt = [blocks[i] + blocks[i + 1] for i in range(0, len(blocks) - 1, 2)]
        if len(blocks) % 2:
            nxt.append(blocks[-1])
        blocks = nxt
    pos = blocks[0]                                                # [BS, HBS]

    score = (content + pos) * inv_scale

    # --- softmax over each (head, batch) group of S key slots ----------------
    # Global-row max is a valid stabilizer for every group; approx reciprocal
    # (EUP) means rows sum to 1 only to ~1e-3.
    m = jnp.max(score, axis=-1, keepdims=True)
    e = jnp.exp(score - m)
    gsum = mm(e, grp_ref[...])                                     # [BS, HBS]
    attn = e * pl.reciprocal(gsum, approx=True) * bmask_ref[...]

    # --- attn @ V (head-block-diag) and output projection ---------------------
    out2d = mm(attn, v_bd)                                         # [BS, D]
    final = mm(out2d, wo_ref[...]) + bo_ref[...]                   # [BS, D]

    out_ref[...] = jnp.concatenate([final, content, pos, attn], axis=-1)


# ---------------------------------------------------------------------------
# Constant masks / one-hots (0/1 -> exact in bf16).
# ---------------------------------------------------------------------------
def _attention_constants(H, S, B, D, Dh, Rp):
    HBS = H * B * S
    PR = H * B * Rp
    d = np.arange(D)

    rows_k = np.arange(HBS)
    h_k = rows_k // (B * S)
    b_k = (rows_k // S) % B
    hm_kv = (d[None, :] // Dh == h_k[:, None]).astype(np.float32)        # [HBS, D]

    rows_p = np.arange(PR)
    h_p = rows_p // (B * Rp)
    b_p = (rows_p // Rp) % B
    r_p = rows_p % Rp
    hm_p = (d[None, :] // Dh == h_p[:, None]).astype(np.float32)         # [PR, D]

    cols = np.arange(S * HBS)
    i_c = cols // HBS
    cc = cols % HBS
    h_c = cc // (B * S)
    b_c = (cc // S) % B
    j_c = cc % S
    shift = ((h_p[:, None] == h_c[None, :]) &
             (b_p[:, None] == b_c[None, :]) &
             (r_p[:, None] == (j_c - i_c + S - 1)[None, :])
             ).astype(np.float32)                                        # [PR, S*HBS]

    grp = ((h_k[:, None] == h_k[None, :]) &
           (b_k[:, None] == b_k[None, :])).astype(np.float32)            # [HBS, HBS]

    row_b = np.arange(B * S) // S
    bmask = (row_b[:, None] == b_k[None, :]).astype(np.float32)          # [BS, HBS]
    return hm_kv, hm_p, shift, grp, bmask


# ---------------------------------------------------------------------------
# Full RelAttXL forward: one single-step pallas_call + cheap XLA unpack.
# ---------------------------------------------------------------------------
def rel_att_xl_forward(params, query, key, value, pos_emb):
    B, S, D = query.shape
    R = pos_emb.shape[1]
    H = HEADS
    Dh = D // H
    # TODO(synk): the replicate-pad branch of relative_shift (R != 2S-1) is not
    # implemented; this module always feeds R == 2S-1.
    assert R == 2 * S - 1, "relative_shift replicate-pad branch not implemented"

    Rp = 2 * S                      # pad each batch's R rows to a sublane multiple
    BS = B * S
    HBS = H * B * S
    PACK = D + 3 * HBS

    hm_kv, hm_p, shift, grp, bmask = _attention_constants(H, S, B, D, Dh, Rp)

    bf = jnp.bfloat16
    Z = jnp.zeros((D, D), jnp.float32)
    w_qkv = jnp.concatenate([
        jnp.concatenate([params["wq"], Z, Z], axis=1),
        jnp.concatenate([Z, params["wk"], Z], axis=1),
        jnp.concatenate([Z, Z, params["wv"]], axis=1)], axis=0).astype(bf)
    b_qkv = jnp.broadcast_to(
        jnp.concatenate([params["bq"], params["bk"], params["bv"]], axis=1),
        (BS, 3 * D)).astype(jnp.float32)
    w_p = params["wp"].astype(bf)
    uvb = jnp.broadcast_to(
        jnp.concatenate([params["u_bias"].reshape(1, D),
                         params["v_bias"].reshape(1, D)], axis=1),
        (BS, 2 * D)).astype(jnp.float32)
    w_o = params["wo"].astype(bf)
    b_o = jnp.broadcast_to(params["bo"], (BS, D)).astype(jnp.float32)

    qkv_in = jnp.concatenate([query, key, value], axis=-1).reshape(BS, 3 * D)
    pe_pad = jnp.concatenate(
        [pos_emb, jnp.zeros((B, Rp - R, D), pos_emb.dtype)],
        axis=1).reshape(B * Rp, D)

    operands = [
        qkv_in,                                   # [BS, 3D]   f32
        pe_pad,                                   # [B*Rp, D]  f32
        w_qkv,                                    # [3D, 3D]   bf16
        b_qkv,                                    # [BS, 3D]   f32
        w_p,                                      # [D, D]     bf16
        uvb,                                      # [BS, 2D]   f32
        jnp.asarray(hm_kv, jnp.float32),          # [HBS, D]
        jnp.asarray(hm_p, jnp.float32),           # [H*B*Rp, D]
        jnp.asarray(shift, bf),                   # [H*B*Rp, S*HBS]
        jnp.asarray(grp, bf),                     # [HBS, HBS]
        jnp.asarray(bmask, jnp.float32),          # [BS, HBS]
        w_o,                                      # [D, D]     bf16
        b_o,                                      # [BS, D]    f32
    ]

    def full_spec(shape):
        return pl.BlockSpec(shape, lambda i: (0,) * len(shape))

    packed = pl.pallas_call(
        _relattxl_fused_kernel,
        out_shape=jax.ShapeDtypeStruct((BS, PACK), jnp.float32),
        grid=(1,),
        in_specs=[full_spec(op.shape) for op in operands],
        out_specs=pl.BlockSpec((BS, PACK), lambda i: (0, 0)),
        compiler_params=pltpu.CompilerParams(
            dimension_semantics=("arbitrary",)),
    )(*operands)

    packed3 = packed.reshape(B, S, PACK)
    final = packed3[:, :, :D]
    eye = jnp.eye(B, dtype=packed.dtype)

    def unpack(off):
        # columns of each 64-wide block are (h, col_batch, j); keep only
        # col_batch == row_batch (cross-batch lanes are garbage / zero).
        blk = packed3[:, :, off:off + HBS].reshape(B, S, H, B, S)
        return jnp.einsum("bshcj,bc->bhsj", blk, eye)

    content_score = unpack(D)
    pos_score = unpack(D + HBS)
    attn = unpack(D + 2 * HBS)

    # dropout has p=0.0 -> identity
    return final, attn, content_score, pos_score


# ---------------------------------------------------------------------------
# Deterministic parameter init (synthetic; shapes match the PyTorch module)
# ---------------------------------------------------------------------------
def init_params(rng):
    keys = jax.random.split(rng, 11)

    def w(kk):
        return jax.random.normal(kk, (D_MODEL, D_MODEL), jnp.float32) / math.sqrt(D_MODEL)

    def b(kk):
        return 0.01 * jax.random.normal(kk, (1, D_MODEL), jnp.float32)

    return dict(
        wq=w(keys[0]), bq=b(keys[1]),
        wk=w(keys[2]), bk=b(keys[3]),
        wv=w(keys[4]), bv=b(keys[5]),
        wo=w(keys[6]), bo=b(keys[7]),
        wp=w(keys[8]),
        u_bias=0.1 * jax.random.normal(keys[9], (HEADS, D_HEAD), jnp.float32),
        v_bias=0.1 * jax.random.normal(keys[10], (HEADS, D_HEAD), jnp.float32),
    )


# ---------------------------------------------------------------------------
# Pure-JAX reference (mirrors the PyTorch forward) for a sanity check
# ---------------------------------------------------------------------------
def reference_forward(params, query, key, value, pos_emb):
    B, S, D = query.shape
    H, Dh = HEADS, D_HEAD
    R = pos_emb.shape[1]

    def lin(x, w, b):
        return x @ w + b

    q = lin(query, params["wq"], params["bq"]).reshape(B, S, H, Dh)
    k = lin(key, params["wk"], params["bk"]).reshape(B, S, H, Dh).transpose(0, 2, 1, 3)
    v = lin(value, params["wv"], params["bv"]).reshape(B, S, H, Dh).transpose(0, 2, 1, 3)
    p = lin(pos_emb, params["wp"], 0.0).reshape(B, R, H, Dh).transpose(0, 2, 1, 3)

    qu = (q + params["u_bias"]).transpose(0, 2, 1, 3)
    qv = (q + params["v_bias"]).transpose(0, 2, 1, 3)

    content = jnp.einsum("bhsd,bhtd->bhst", qu, k)
    pos_raw = jnp.einsum("bhsd,bhrd->bhsr", qv, p)

    rel = jnp.arange(S)[None, :] - jnp.arange(S)[:, None] + (S - 1)   # [S, S]
    pos = jnp.take_along_axis(pos_raw, jnp.broadcast_to(rel, (B, H, S, S)), axis=-1)

    score = (content + pos) / DIM_SCALE
    attn = jax.nn.softmax(score, axis=-1)
    out = jnp.einsum("bhst,bhtd->bhsd", attn, v).transpose(0, 2, 1, 3).reshape(B, S, D)
    final = lin(out, params["wo"], params["bo"])
    return final, attn, content, pos


# ---------------------------------------------------------------------------
if __name__ == "__main__":
    root = jax.random.PRNGKey(0)
    kp, kq, kk, kv, kpe = jax.random.split(root, 5)

    params = init_params(kp)
    query = jax.random.normal(kq, (BATCH, SEQ, D_MODEL), jnp.float32)
    key_in = jax.random.normal(kk, (BATCH, SEQ, D_MODEL), jnp.float32)
    value = jax.random.normal(kv, (BATCH, SEQ, D_MODEL), jnp.float32)
    pos_emb = jax.random.normal(kpe, (BATCH, REL, D_MODEL), jnp.float32)

    fwd = jax.jit(rel_att_xl_forward)
    out, attn, content_score, pos_score = fwd(params, query, key_in, value, pos_emb)
    jax.block_until_ready((out, attn, content_score, pos_score))

    ref_out, ref_attn, ref_cs, ref_ps = reference_forward(
        params, query, key_in, value, pos_emb)

    # Tolerances sized for bf16 MXU operands (f32 accumulation): raw scores are
    # O(5), with ~1-2e-2 absolute bf16 rounding noise; attn / final are much
    # tighter.  Structural bugs would produce O(1) errors and still fail.
    np.testing.assert_allclose(np.asarray(content_score), np.asarray(ref_cs),
                               rtol=5e-2, atol=1e-1)
    np.testing.assert_allclose(np.asarray(pos_score), np.asarray(ref_ps),
                               rtol=5e-2, atol=1e-1)
    np.testing.assert_allclose(np.asarray(attn), np.asarray(ref_attn),
                               rtol=3e-2, atol=3e-2)
    np.testing.assert_allclose(np.asarray(out), np.asarray(ref_out),
                               rtol=5e-2, atol=1e-1)

    print("KERNEL_OK")
</pallas_src>

<mosaic_0001>
module attributes {stable_mosaic.version = 11 : i64} {
  func.func @_relattxl_fused_kernel(%arg0: i32, %arg1: memref<16x96xf32, #tpu.memory_space<vmem>>, %arg2: memref<32x32xf32, #tpu.memory_space<vmem>>, %arg3: memref<96x96xbf16, #tpu.memory_space<vmem>>, %arg4: memref<16x96xf32, #tpu.memory_space<vmem>>, %arg5: memref<32x32xbf16, #tpu.memory_space<vmem>>, %arg6: memref<16x64xf32, #tpu.memory_space<vmem>>, %arg7: memref<64x32xf32, #tpu.memory_space<vmem>>, %arg8: memref<128x32xf32, #tpu.memory_space<vmem>>, %arg9: memref<128x512xbf16, #tpu.memory_space<vmem>>, %arg10: memref<64x64xbf16, #tpu.memory_space<vmem>>, %arg11: memref<16x64xf32, #tpu.memory_space<vmem>>, %arg12: memref<32x32xbf16, #tpu.memory_space<vmem>>, %arg13: memref<16x32xf32, #tpu.memory_space<vmem>>, %arg14: memref<16x224xf32, #tpu.memory_space<vmem>>) attributes {dimension_semantics = [#tpu.dimension_semantics<arbitrary>], iteration_bounds = array<i64: 1>, scalar_prefetch = 0 : i64, scratch_operands = 0 : i64, tpu.core_type = #tpu.core_type<tc>, window_params = [{pipeline_mode = #tpu.pipeline_mode<synchronous>, transform_indices = @transform_0, window_bounds = array<i64: 16, 96>}, {pipeline_mode = #tpu.pipeline_mode<synchronous>, transform_indices = @transform_1, window_bounds = array<i64: 32, 32>}, {pipeline_mode = #tpu.pipeline_mode<synchronous>, transform_indices = @transform_2, window_bounds = array<i64: 96, 96>}, {pipeline_mode = #tpu.pipeline_mode<synchronous>, transform_indices = @transform_3, window_bounds = array<i64: 16, 96>}, {pipeline_mode = #tpu.pipeline_mode<synchronous>, transform_indices = @transform_4, window_bounds = array<i64: 32, 32>}, {pipeline_mode = #tpu.pipeline_mode<synchronous>, transform_indices = @transform_5, window_bounds = array<i64: 16, 64>}, {pipeline_mode = #tpu.pipeline_mode<synchronous>, transform_indices = @transform_6, window_bounds = array<i64: 64, 32>}, {pipeline_mode = #tpu.pipeline_mode<synchronous>, transform_indices = @transform_7, window_bounds = array<i64: 128, 32>}, {pipeline_mode = #tpu.pipeline_mode<synchronous>, transform_indices = @transform_8, window_bounds = array<i64: 128, 512>}, {pipeline_mode = #tpu.pipeline_mode<synchronous>, transform_indices = @transform_9, window_bounds = array<i64: 64, 64>}, {pipeline_mode = #tpu.pipeline_mode<synchronous>, transform_indices = @transform_10, window_bounds = array<i64: 16, 64>}, {pipeline_mode = #tpu.pipeline_mode<synchronous>, transform_indices = @transform_11, window_bounds = array<i64: 32, 32>}, {pipeline_mode = #tpu.pipeline_mode<synchronous>, transform_indices = @transform_12, window_bounds = array<i64: 16, 32>}, {pipeline_mode = #tpu.pipeline_mode<synchronous>, transform_indices = @transform_13, window_bounds = array<i64: 16, 224>}]} {
    %c0 = arith.constant 0 : index
    %c0_0 = arith.constant 0 : index
    %0 = vector.load %arg1[%c0, %c0_0] : memref<16x96xf32, #tpu.memory_space<vmem>>, vector<16x96xf32>
    %c0_1 = arith.constant 0 : index
    %c0_2 = arith.constant 0 : index
    %1 = vector.load %arg3[%c0_1, %c0_2] : memref<96x96xbf16, #tpu.memory_space<vmem>>, vector<96x96xbf16>
    %2 = arith.truncf %0 : vector<16x96xf32> to vector<16x96xbf16>
    %cst = arith.constant dense<0.000000e+00> : vector<16x96xf32>
    %3 = tpu.matmul %2, %1, %cst {dimension_numbers = #tpu.dot_dimension_numbers<[1], [0], [0], [1], [0, 0, 1, 1], [], []>} : vector<16x96xbf16>, vector<96x96xbf16>, vector<16x96xf32> -> vector<16x96xf32>
    %c0_3 = arith.constant 0 : index
    %c0_4 = arith.constant 0 : index
    %4 = vector.load %arg4[%c0_3, %c0_4] : memref<16x96xf32, #tpu.memory_space<vmem>>, vector<16x96xf32>
    %5 = arith.addf %3, %4 : vector<16x96xf32>
    %6 = vector.extract_strided_slice %5 {offsets = [0, 0], sizes = [16, 32], strides = [1, 1]} : vector<16x96xf32> to vector<16x32xf32>
    %7 = vector.extract_strided_slice %5 {offsets = [0, 32], sizes = [16, 32], strides = [1, 1]} : vector<16x96xf32> to vector<16x32xf32>
    %8 = vector.extract_strided_slice %5 {offsets = [0, 64], sizes = [16, 32], strides = [1, 1]} : vector<16x96xf32> to vector<16x32xf32>
    %c0_5 = arith.constant 0 : index
    %c0_6 = arith.constant 0 : index
    %9 = vector.load %arg2[%c0_5, %c0_6] : memref<32x32xf32, #tpu.memory_space<vmem>>, vector<32x32xf32>
    %c0_7 = arith.constant 0 : index
    %c0_8 = arith.constant 0 : index
    %10 = vector.load %arg5[%c0_7, %c0_8] : memref<32x32xbf16, #tpu.memory_space<vmem>>, vector<32x32xbf16>
    %11 = arith.truncf %9 : vector<32x32xf32> to vector<32x32xbf16>
    %cst_9 = arith.constant dense<0.000000e+00> : vector<32x32xf32>
    %12 = tpu.matmul %11, %10, %cst_9 {dimension_numbers = #tpu.dot_dimension_numbers<[1], [0], [0], [1], [0, 0, 1, 1], [], []>} : vector<32x32xbf16>, vector<32x32xbf16>, vector<32x32xf32> -> vector<32x32xf32>
    %c0_10 = arith.constant 0 : index
    %c0_11 = arith.constant 0 : index
    %13 = vector.load %arg6[%c0_10, %c0_11] : memref<16x64xf32, #tpu.memory_space<vmem>>, vector<16x32xf32>
    %14 = arith.addf %6, %13 : vector<16x32xf32>
    %c0_12 = arith.constant 0 : index
    %c32 = arith.constant 32 : index
    %15 = vector.load %arg6[%c0_12, %c32] : memref<16x64xf32, #tpu.memory_space<vmem>>, vector<16x32xf32>
    %16 = arith.addf %6, %15 : vector<16x32xf32>
    %17 = tpu.concatenate %7, %7, %7, %7 in 0 : vector<16x32xf32>, vector<16x32xf32>, vector<16x32xf32>, vector<16x32xf32> -> vector<64x32xf32>
    %c0_13 = arith.constant 0 : index
    %c0_14 = arith.constant 0 : index
    %18 = vector.load %arg7[%c0_13, %c0_14] : memref<64x32xf32, #tpu.memory_space<vmem>>, vector<64x32xf32>
    %19 = arith.mulf %17, %18 : vector<64x32xf32>
    %20 = tpu.concatenate %8, %8, %8, %8 in 0 : vector<16x32xf32>, vector<16x32xf32>, vector<16x32xf32>, vector<16x32xf32> -> vector<64x32xf32>
    %c0_15 = arith.constant 0 : index
    %c0_16 = arith.constant 0 : index
    %21 = vector.load %arg7[%c0_15, %c0_16] : memref<64x32xf32, #tpu.memory_space<vmem>>, vector<64x32xf32>
    %22 = arith.mulf %20, %21 : vector<64x32xf32>
    %23 = tpu.concatenate %12, %12, %12, %12 in 0 : vector<32x32xf32>, vector<32x32xf32>, vector<32x32xf32>, vector<32x32xf32> -> vector<128x32xf32>
    %c0_17 = arith.constant 0 : index
    %c0_18 = arith.constant 0 : index
    %24 = vector.load %arg8[%c0_17, %c0_18] : memref<128x32xf32, #tpu.memory_space<vmem>>, vector<128x32xf32>
    %25 = arith.mulf %23, %24 : vector<128x32xf32>
    %26 = arith.truncf %14 : vector<16x32xf32> to vector<16x32xbf16>
    %27 = arith.truncf %19 : vector<64x32xf32> to vector<64x32xbf16>
    %cst_19 = arith.constant dense<0.000000e+00> : vector<16x64xf32>
    %28 = tpu.matmul %26, %27, %cst_19 {dimension_numbers = #tpu.dot_dimension_numbers<[1], [1], [0], [0], [0, 0, 1, 0], [], []>} : vector<16x32xbf16>, vector<64x32xbf16>, vector<16x64xf32> -> vector<16x64xf32>
    %29 = arith.truncf %16 : vector<16x32xf32> to vector<16x32xbf16>
    %30 = arith.truncf %25 : vector<128x32xf32> to vector<128x32xbf16>
    %cst_20 = arith.constant dense<0.000000e+00> : vector<16x128xf32>
    %31 = tpu.matmul %29, %30, %cst_20 {dimension_numbers = #tpu.dot_dimension_numbers<[1], [1], [0], [0], [0, 0, 1, 0], [], []>} : vector<16x32xbf16>, vector<128x32xbf16>, vector<16x128xf32> -> vector<16x128xf32>
    %c0_21 = arith.constant 0 : index
    %c0_22 = arith.constant 0 : index
    %32 = vector.load %arg9[%c0_21, %c0_22] : memref<128x512xbf16, #tpu.memory_space<vmem>>, vector<128x512xbf16>
    %33 = arith.truncf %31 : vector<16x128xf32> to vector<16x128xbf16>
    %cst_23 = arith.constant dense<0.000000e+00> : vector<16x512xf32>
    %34 = tpu.matmul %33, %32, %cst_23 {dimension_numbers = #tpu.dot_dimension_numbers<[1], [0], [0], [1], [0, 0, 1, 1], [], []>} : vector<16x128xbf16>, vector<128x512xbf16>, vector<16x512xf32> -> vector<16x512xf32>
    %35 = tpu.iota {dimensions = array<i32: 0>} : vector<16x1xi32>
    %c8_i32 = arith.constant 8 : i32
    %c0_i32 = arith.constant 0 : i32
    %36 = arith.cmpi eq, %c8_i32, %c0_i32 : i32
    %c1_i32 = arith.constant 1 : i32
    %37 = arith.select %36, %c1_i32, %c8_i32 : i32
    %38 = vector.broadcast %37 : i32 to vector<16x1xi32>
    %39 = arith.remsi %35, %38 : vector<16x1xi32>
    %c0_i32_24 = arith.constant 0 : i32
    %40 = vector.broadcast %c0_i32_24 : i32 to vector<16x1xi32>
    %41 = arith.cmpi ne, %39, %40 : vector<16x1xi32>
    %c0_i32_25 = arith.constant 0 : i32
    %42 = vector.broadcast %c0_i32_25 : i32 to vector<16x1xi32>
    %43 = arith.cmpi slt, %39, %42 : vector<16x1xi32>
    %c0_i32_26 = arith.constant 0 : i32
    %44 = arith.cmpi slt, %37, %c0_i32_26 : i32
    %45 = vector.broadcast %44 : i1 to vector<16x1xi1>
    %46 = vector.broadcast %45 : vector<16x1xi1> to vector<16x1xi1>
    %47 = arith.xori %43, %46 : vector<16x1xi1>
    %48 = arith.andi %47, %41 : vector<16x1xi1>
    %49 = vector.broadcast %37 : i32 to vector<16x1xi32>
    %50 = arith.addi %39, %49 : vector<16x1xi32>
    %51 = arith.select %48, %50, %39 : vector<16x1xi1>, vector<16x1xi32>
    %52 = vector.extract_strided_slice %34 {offsets = [0, 0], sizes = [16, 64], strides = [1, 1]} : vector<16x512xf32> to vector<16x64xf32>
    %c0_i32_27 = arith.constant 0 : i32
    %53 = vector.broadcast %c0_i32_27 : i32 to vector<16x1xi32>
    %54 = arith.cmpi eq, %51, %53 : vector<16x1xi32>
    %55 = arith.extui %54 : vector<16x1xi1> to vector<16x1xi32>
    %56 = arith.sitofp %55 : vector<16x1xi32> to vector<16x1xf32>
    %57 = vector.broadcast %56 : vector<16x1xf32> to vector<16x64xf32>
    %58 = arith.mulf %52, %57 : vector<16x64xf32>
    %59 = vector.extract_strided_slice %34 {offsets = [0, 64], sizes = [16, 64], strides = [1, 1]} : vector<16x512xf32> to vector<16x64xf32>
    %c1_i32_28 = arith.constant 1 : i32
    %60 = vector.broadcast %c1_i32_28 : i32 to vector<16x1xi32>
    %61 = arith.cmpi eq, %51, %60 : vector<16x1xi32>
    %62 = arith.extui %61 : vector<16x1xi1> to vector<16x1xi32>
    %63 = arith.sitofp %62 : vector<16x1xi32> to vector<16x1xf32>
    %64 = vector.broadcast %63 : vector<16x1xf32> to vector<16x64xf32>
    %65 = arith.mulf %59, %64 : vector<16x64xf32>
    %66 = vector.extract_strided_slice %34 {offsets = [0, 128], sizes = [16, 64], strides = [1, 1]} : vector<16x512xf32> to vector<16x64xf32>
    %c2_i32 = arith.constant 2 : i32
    %67 = vector.broadcast %c2_i32 : i32 to vector<16x1xi32>
    %68 = arith.cmpi eq, %51, %67 : vector<16x1xi32>
    %69 = arith.extui %68 : vector<16x1xi1> to vector<16x1xi32>
    %70 = arith.sitofp %69 : vector<16x1xi32> to vector<16x1xf32>
    %71 = vector.broadcast %70 : vector<16x1xf32> to vector<16x64xf32>
    %72 = arith.mulf %66, %71 : vector<16x64xf32>
    %73 = vector.extract_strided_slice %34 {offsets = [0, 192], sizes = [16, 64], strides = [1, 1]} : vector<16x512xf32> to vector<16x64xf32>
    %c3_i32 = arith.constant 3 : i32
    %74 = vector.broadcast %c3_i32 : i32 to vector<16x1xi32>
    %75 = arith.cmpi eq, %51, %74 : vector<16x1xi32>
    %76 = arith.extui %75 : vector<16x1xi1> to vector<16x1xi32>
    %77 = arith.sitofp %76 : vector<16x1xi32> to vector<16x1xf32>
    %78 = vector.broadcast %77 : vector<16x1xf32> to vector<16x64xf32>
    %79 = arith.mulf %73, %78 : vector<16x64xf32>
    %80 = vector.extract_strided_slice %34 {offsets = [0, 256], sizes = [16, 64], strides = [1, 1]} : vector<16x512xf32> to vector<16x64xf32>
    %c4_i32 = arith.constant 4 : i32
    %81 = vector.broadcast %c4_i32 : i32 to vector<16x1xi32>
    %82 = arith.cmpi eq, %51, %81 : vector<16x1xi32>
    %83 = arith.extui %82 : vector<16x1xi1> to vector<16x1xi32>
    %84 = arith.sitofp %83 : vector<16x1xi32> to vector<16x1xf32>
    %85 = vector.broadcast %84 : vector<16x1xf32> to vector<16x64xf32>
    %86 = arith.mulf %80, %85 : vector<16x64xf32>
    %87 = vector.extract_strided_slice %34 {offsets = [0, 320], sizes = [16, 64], strides = [1, 1]} : vector<16x512xf32> to vector<16x64xf32>
    %c5_i32 = arith.constant 5 : i32
    %88 = vector.broadcast %c5_i32 : i32 to vector<16x1xi32>
    %89 = arith.cmpi eq, %51, %88 : vector<16x1xi32>
    %90 = arith.extui %89 : vector<16x1xi1> to vector<16x1xi32>
    %91 = arith.sitofp %90 : vector<16x1xi32> to vector<16x1xf32>
    %92 = vector.broadcast %91 : vector<16x1xf32> to vector<16x64xf32>
    %93 = arith.mulf %87, %92 : vector<16x64xf32>
    %94 = vector.extract_strided_slice %34 {offsets = [0, 384], sizes = [16, 64], strides = [1, 1]} : vector<16x512xf32> to vector<16x64xf32>
    %c6_i32 = arith.constant 6 : i32
    %95 = vector.broadcast %c6_i32 : i32 to vector<16x1xi32>
    %96 = arith.cmpi eq, %51, %95 : vector<16x1xi32>
    %97 = arith.extui %96 : vector<16x1xi1> to vector<16x1xi32>
    %98 = arith.sitofp %97 : vector<16x1xi32> to vector<16x1xf32>
    %99 = vector.broadcast %98 : vector<16x1xf32> to vector<16x64xf32>
    %100 = arith.mulf %94, %99 : vector<16x64xf32>
    %101 = vector.extract_strided_slice %34 {offsets = [0, 448], sizes = [16, 64], strides = [1, 1]} : vector<16x512xf32> to vector<16x64xf32>
    %c7_i32 = arith.constant 7 : i32
    %102 = vector.broadcast %c7_i32 : i32 to vector<16x1xi32>
    %103 = arith.cmpi eq, %51, %102 : vector<16x1xi32>
    %104 = arith.extui %103 : vector<16x1xi1> to vector<16x1xi32>
    %105 = arith.sitofp %104 : vector<16x1xi32> to vector<16x1xf32>
    %106 = vector.broadcast %105 : vector<16x1xf32> to vector<16x64xf32>
    %107 = arith.mulf %101, %106 : vector<16x64xf32>
    %108 = arith.addf %58, %65 : vector<16x64xf32>
    %109 = arith.addf %72, %79 : vector<16x64xf32>
    %110 = arith.addf %86, %93 : vector<16x64xf32>
    %111 = arith.addf %100, %107 : vector<16x64xf32>
    %112 = arith.addf %108, %109 : vector<16x64xf32>
    %113 = arith.addf %110, %111 : vector<16x64xf32>
    %114 = arith.addf %112, %113 : vector<16x64xf32>
    %115 = arith.addf %28, %114 : vector<16x64xf32>
    %cst_29 = arith.constant 0.176776692 : f32
    %116 = vector.broadcast %cst_29 : f32 to vector<16x64xf32>
    %117 = arith.mulf %115, %116 : vector<16x64xf32>
    %cst_30 = arith.constant dense<0xFF800000> : vector<16xf32>
    %118 = vector.multi_reduction <maximumf>, %117, %cst_30 [1] : vector<16x64xf32> to vector<16xf32>
    %119 = vector.shape_cast %118 : vector<16xf32> to vector<16x1xf32>
    %120 = vector.broadcast %119 : vector<16x1xf32> to vector<16x64xf32>
    %121 = arith.subf %117, %120 : vector<16x64xf32>
    %122 = math.exp %121 : vector<16x64xf32>
    %c0_31 = arith.constant 0 : index
    %c0_32 = arith.constant 0 : index
    %123 = vector.load %arg10[%c0_31, %c0_32] : memref<64x64xbf16, #tpu.memory_space<vmem>>, vector<64x64xbf16>
    %124 = arith.truncf %122 : vector<16x64xf32> to vector<16x64xbf16>
    %cst_33 = arith.constant dense<0.000000e+00> : vector<16x64xf32>
    %125 = tpu.matmul %124, %123, %cst_33 {dimension_numbers = #tpu.dot_dimension_numbers<[1], [0], [0], [1], [0, 0, 1, 1], [], []>} : vector<16x64xbf16>, vector<64x64xbf16>, vector<16x64xf32> -> vector<16x64xf32>
    %126 = tpu.reciprocal %125 {approx = true} : vector<16x64xf32> -> vector<16x64xf32>
    %127 = arith.mulf %122, %126 : vector<16x64xf32>
    %c0_34 = arith.constant 0 : index
    %c0_35 = arith.constant 0 : index
    %128 = vector.load %arg11[%c0_34, %c0_35] : memref<16x64xf32, #tpu.memory_space<vmem>>, vector<16x64xf32>
    %129 = arith.mulf %127, %128 : vector<16x64xf32>
    %130 = arith.truncf %129 : vector<16x64xf32> to vector<16x64xbf16>
    %131 = arith.truncf %22 : vector<64x32xf32> to vector<64x32xbf16>
    %cst_36 = arith.constant dense<0.000000e+00> : vector<16x32xf32>
    %132 = tpu.matmul %130, %131, %cst_36 {dimension_numbers = #tpu.dot_dimension_numbers<[1], [0], [0], [1], [0, 0, 1, 1], [], []>} : vector<16x64xbf16>, vector<64x32xbf16>, vector<16x32xf32> -> vector<16x32xf32>
    %c0_37 = arith.constant 0 : index
    %c0_38 = arith.constant 0 : index
    %133 = vector.load %arg12[%c0_37, %c0_38] : memref<32x32xbf16, #tpu.memory_space<vmem>>, vector<32x32xbf16>
    %134 = arith.truncf %132 : vector<16x32xf32> to vector<16x32xbf16>
    %cst_39 = arith.constant dense<0.000000e+00> : vector<16x32xf32>
    %135 = tpu.matmul %134, %133, %cst_39 {dimension_numbers = #tpu.dot_dimension_numbers<[1], [0], [0], [1], [0, 0, 1, 1], [], []>} : vector<16x32xbf16>, vector<32x32xbf16>, vector<16x32xf32> -> vector<16x32xf32>
    %c0_40 = arith.constant 0 : index
    %c0_41 = arith.constant 0 : index
    %136 = vector.load %arg13[%c0_40, %c0_41] : memref<16x32xf32, #tpu.memory_space<vmem>>, vector<16x32xf32>
    %137 = arith.addf %135, %136 : vector<16x32xf32>
    %138 = tpu.concatenate %137, %28, %114, %129 in 1 : vector<16x32xf32>, vector<16x64xf32>, vector<16x64xf32>, vector<16x64xf32> -> vector<16x224xf32>
    %c0_42 = arith.constant 0 : index
    %c0_43 = arith.constant 0 : index
    %139 = vector.load %arg14[%c0_42, %c0_43] : memref<16x224xf32, #tpu.memory_space<vmem>>, vector<16x224xf32>
    tpu.vector_store %arg14[%c0_42, %c0_43], %138 {strides = array<i32>} : memref<16x224xf32, #tpu.memory_space<vmem>>, vector<16x224xf32>,
    return
  }
  func.func @transform_0(%arg0: i32) -> (i32, i32) {
    %c0_i32 = arith.constant 0 : i32
    %c0_i32_0 = arith.constant 0 : i32
    %c0_i32_1 = arith.constant 0 : i32
    return %c0_i32, %c0_i32_0 : i32, i32
  }
  func.func @transform_1(%arg0: i32) -> (i32, i32) {
    %c0_i32 = arith.constant 0 : i32
    %c0_i32_0 = arith.constant 0 : i32
    %c0_i32_1 = arith.constant 0 : i32
    return %c0_i32, %c0_i32_0 : i32, i32
  }
  func.func @transform_2(%arg0: i32) -> (i32, i32) {
    %c0_i32 = arith.constant 0 : i32
    %c0_i32_0 = arith.constant 0 : i32
    %c0_i32_1 = arith.constant 0 : i32
    return %c0_i32, %c0_i32_0 : i32, i32
  }
  func.func @transform_3(%arg0: i32) -> (i32, i32) {
    %c0_i32 = arith.constant 0 : i32
    %c0_i32_0 = arith.constant 0 : i32
    %c0_i32_1 = arith.constant 0 : i32
    return %c0_i32, %c0_i32_0 : i32, i32
  }
  func.func @transform_4(%arg0: i32) -> (i32, i32) {
    %c0_i32 = arith.constant 0 : i32
    %c0_i32_0 = arith.constant 0 : i32
    %c0_i32_1 = arith.constant 0 : i32
    return %c0_i32, %c0_i32_0 : i32, i32
  }
  func.func @transform_5(%arg0: i32) -> (i32, i32) {
    %c0_i32 = arith.constant 0 : i32
    %c0_i32_0 = arith.constant 0 : i32
    %c0_i32_1 = arith.constant 0 : i32
    return %c0_i32, %c0_i32_0 : i32, i32
  }
  func.func @transform_6(%arg0: i32) -> (i32, i32) {
    %c0_i32 = arith.constant 0 : i32
    %c0_i32_0 = arith.constant 0 : i32
    %c0_i32_1 = arith.constant 0 : i32
    return %c0_i32, %c0_i32_0 : i32, i32
  }
  func.func @transform_7(%arg0: i32) -> (i32, i32) {
    %c0_i32 = arith.constant 0 : i32
    %c0_i32_0 = arith.constant 0 : i32
    %c0_i32_1 = arith.constant 0 : i32
    return %c0_i32, %c0_i32_0 : i32, i32
  }
  func.func @transform_8(%arg0: i32) -> (i32, i32) {
    %c0_i32 = arith.constant 0 : i32
    %c0_i32_0 = arith.constant 0 : i32
    %c0_i32_1 = arith.constant 0 : i32
    return %c0_i32, %c0_i32_0 : i32, i32
  }
  func.func @transform_9(%arg0: i32) -> (i32, i32) {
    %c0_i32 = arith.constant 0 : i32
    %c0_i32_0 = arith.constant 0 : i32
    %c0_i32_1 = arith.constant 0 : i32
    return %c0_i32, %c0_i32_0 : i32, i32
  }
  func.func @transform_10(%arg0: i32) -> (i32, i32) {
    %c0_i32 = arith.constant 0 : i32
    %c0_i32_0 = arith.constant 0 : i32
    %c0_i32_1 = arith.constant 0 : i32
    return %c0_i32, %c0_i32_0 : i32, i32
  }
  func.func @transform_11(%arg0: i32) -> (i32, i32) {
    %c0_i32 = arith.constant 0 : i32
    %c0_i32_0 = arith.constant 0 : i32
    %c0_i32_1 = arith.constant 0 : i32
    return %c0_i32, %c0_i32_0 : i32, i32
  }
  func.func @transform_12(%arg0: i32) -> (i32, i32) {
    %c0_i32 = arith.constant 0 : i32
    %c0_i32_0 = arith.constant 0 : i32
    %c0_i32_1 = arith.constant 0 : i32
    return %c0_i32, %c0_i32_0 : i32, i32
  }
  func.func @transform_13(%arg0: i32) -> (i32, i32) {
    %c0_i32 = arith.constant 0 : i32
    %c0_i32_0 = arith.constant 0 : i32
    %c0_i32_1 = arith.constant 0 : i32
    return %c0_i32, %c0_i32_0 : i32, i32
  }
}

</mosaic_0001>

<llo_original>
// kernel: rel_att_xl_forward.1
$region0: #{rel_att_xl_forward.1}
  #allocation0 [shape = 'u32[]', space=smem, size = 0x4, offset = 0x4, fixed_abs, tag = 'smem constant byte address 0x4 - core index']
  #allocation1 [shape = 'u32[144,128]{1,0:T(1,128)}', space=vmem, size = 0x12000, scoped, tag = 'internal scratch']
  %s0 = inlined_call_operand.vmem [shape: f32[16,96], index: 0, kind: input, shape index: {}]
  %s1 = inlined_call_operand.vmem [shape: f32[32,32], index: 1, kind: input, shape index: {}]
  %s2 = inlined_call_operand.vmem [shape: bf16[96,96], index: 2, kind: input, shape index: {}]
  %s3 = inlined_call_operand.vmem [shape: f32[16,96], index: 3, kind: input, shape index: {}]
  %s4 = inlined_call_operand.vmem [shape: bf16[32,32], index: 4, kind: input, shape index: {}]
  %s5 = inlined_call_operand.vmem [shape: f32[16,64], index: 5, kind: input, shape index: {}]
  %s6 = inlined_call_operand.vmem [shape: f32[64,32], index: 6, kind: input, shape index: {}]
  %s7 = inlined_call_operand.vmem [shape: f32[128,32], index: 7, kind: input, shape index: {}]
  %s8 = inlined_call_operand.vmem [shape: bf16[128,512], index: 8, kind: input, shape index: {}]
  %s9 = inlined_call_operand.vmem [shape: bf16[64,64], index: 9, kind: input, shape index: {}]
  %s10 = inlined_call_operand.vmem [shape: f32[16,64], index: 10, kind: input, shape index: {}]
  %s11 = inlined_call_operand.vmem [shape: bf16[32,32], index: 11, kind: input, shape index: {}]
  %s12 = inlined_call_operand.vmem [shape: f32[16,32], index: 12, kind: input, shape index: {}]
  %s13 = inlined_call_operand.vmem [shape: f32[16,224], index: 13, kind: output, shape index: {}]
  %s14 = sld [smem:[#allocation0]]
  $region62: #{rel_att_xl_forward.1} parent=0
    _
  %s16 = ssub.s32 1, %s14
  %s17 = scalar_select 0, %s16, %s14
  // Predicated region
  $region2: #{rel_att_xl_forward.1} parent=0 // pred_check
    _
  $region3: #{rel_att_xl_forward.1} parent=0 // pred_check_branch
    %19 = sbr.rel (0) target = $region5
  $region4: #{rel_att_xl_forward.1} parent=0 // pred_region
    _
  $region5: #{rel_att_xl_forward.1} parent=0 // pred_fallthru
    _
  // Predicated region
  $region6: #{rel_att_xl_forward.1} parent=0 // pred_check
    _
  $region7: #{rel_att_xl_forward.1} parent=0 // pred_check_branch
    %21 = sbr.rel (0) target = $region9
  $region8: #{rel_att_xl_forward.1} parent=0 // pred_region
    _
  $region9: #{rel_att_xl_forward.1} parent=0 // pred_fallthru
    _
  // Predicated region
  $region10: #{rel_att_xl_forward.1} parent=0 // pred_check
    _
  $region11: #{rel_att_xl_forward.1} parent=0 // pred_check_branch
    %23 = sbr.rel (0) target = $region13
  $region12: #{rel_att_xl_forward.1} parent=0 // pred_region
    _
  $region13: #{rel_att_xl_forward.1} parent=0 // pred_fallthru
    _
  // Predicated region
  $region14: #{rel_att_xl_forward.1} parent=0 // pred_check
    _
  $region15: #{rel_att_xl_forward.1} parent=0 // pred_check_branch
    %25 = sbr.rel (0) target = $region17
  $region16: #{rel_att_xl_forward.1} parent=0 // pred_region
    _
  $region17: #{rel_att_xl_forward.1} parent=0 // pred_fallthru
    _
  // Predicated region
  $region18: #{rel_att_xl_forward.1} parent=0 // pred_check
    _
  $region19: #{rel_att_xl_forward.1} parent=0 // pred_check_branch
    %27 = sbr.rel (0) target = $region21
  $region20: #{rel_att_xl_forward.1} parent=0 // pred_region
    _
  $region21: #{rel_att_xl_forward.1} parent=0 // pred_fallthru
    _
  // Predicated region
  $region22: #{rel_att_xl_forward.1} parent=0 // pred_check
    _
  $region23: #{rel_att_xl_forward.1} parent=0 // pred_check_branch
    %29 = sbr.rel (0) target = $region25
  $region24: #{rel_att_xl_forward.1} parent=0 // pred_region
    _
  $region25: #{rel_att_xl_forward.1} parent=0 // pred_fallthru
    _
  // Predicated region
  $region26: #{rel_att_xl_forward.1} parent=0 // pred_check
    _
  $region27: #{rel_att_xl_forward.1} parent=0 // pred_check_branch
    %31 = sbr.rel (0) target = $region29
  $region28: #{rel_att_xl_forward.1} parent=0 // pred_region
    _
  $region29: #{rel_att_xl_forward.1} parent=0 // pred_fallthru
    _
  // Predicated region
  $region30: #{rel_att_xl_forward.1} parent=0 // pred_check
    _
  $region31: #{rel_att_xl_forward.1} parent=0 // pred_check_branch
    %33 = sbr.rel (0) target = $region33
  $region32: #{rel_att_xl_forward.1} parent=0 // pred_region
    _
  $region33: #{rel_att_xl_forward.1} parent=0 // pred_fallthru
    _
  // Predicated region
  $region34: #{rel_att_xl_forward.1} parent=0 // pred_check
    _
  $region35: #{rel_att_xl_forward.1} parent=0 // pred_check_branch
    %35 = sbr.rel (0) target = $region37
  $region36: #{rel_att_xl_forward.1} parent=0 // pred_region
    _
  $region37: #{rel_att_xl_forward.1} parent=0 // pred_fallthru
    _
  // Predicated region
  $region38: #{rel_att_xl_forward.1} parent=0 // pred_check
    _
  $region39: #{rel_att_xl_forward.1} parent=0 // pred_check_branch
    %37 = sbr.rel (0) target = $region41
  $region40: #{rel_att_xl_forward.1} parent=0 // pred_region
    _
  $region41: #{rel_att_xl_forward.1} parent=0 // pred_fallthru
    _
  // Predicated region
  $region42: #{rel_att_xl_forward.1} parent=0 // pred_check
    _
  $region43: #{rel_att_xl_forward.1} parent=0 // pred_check_branch
    %39 = sbr.rel (0) target = $region45
  $region44: #{rel_att_xl_forward.1} parent=0 // pred_region
    _
  $region45: #{rel_att_xl_forward.1} parent=0 // pred_fallthru
    _
  // Predicated region
  $region46: #{rel_att_xl_forward.1} parent=0 // pred_check
    _
  $region47: #{rel_att_xl_forward.1} parent=0 // pred_check_branch
    %41 = sbr.rel (0) target = $region49
  $region48: #{rel_att_xl_forward.1} parent=0 // pred_region
    _
  $region49: #{rel_att_xl_forward.1} parent=0 // pred_fallthru
    _
  // Predicated region
  $region50: #{rel_att_xl_forward.1} parent=0 // pred_check
    _
  $region51: #{rel_att_xl_forward.1} parent=0 // pred_check_branch
    %43 = sbr.rel (0) target = $region53
  $region52: #{rel_att_xl_forward.1} parent=0 // pred_region
    _
  $region53: #{rel_att_xl_forward.1} parent=0 // pred_fallthru
    _
  %v45 = vld [vmem:[%s0] sm:$0xff]
  %v46 = vld [vmem:[%s0 + $0x8] sm:$0xff]
  %v47 = vld [vmem:[%s2] sm:$0xf]
  %v48 = vld [vmem:[%s2 + $0x4] sm:$0xf]
  %v49 = vld [vmem:[%s2 + $0x8] sm:$0xf]
  %v50 = vld [vmem:[%s2 + $0xc] sm:$0xf]
  %v51 = vld [vmem:[%s2 + $0x10] sm:$0xf]
  %v52 = vld [vmem:[%s2 + $0x14] sm:$0xf]
  %v53 = vld [vmem:[%s2 + $0x18] sm:$0xf]
  %v54 = vld [vmem:[%s2 + $0x1c] sm:$0xf]
  %v55 = vld [vmem:[%s2 + $0x20] sm:$0xf]
  %v56 = vld [vmem:[%s2 + $0x24] sm:$0xf]
  %v57 = vld [vmem:[%s2 + $0x28] sm:$0xf]
  %v58 = vld [vmem:[%s2 + $0x2c] sm:$0xf]
  %v59 = vpack.c.bf16 %v46, %v45
  %v60 = vld [vmem:[%s3] sm:$0xff]
  %v61 = vld [vmem:[%s3 + $0x8] sm:$0xff]
  %v74 = vunpack.c.l.b16 %v47
  %v75 = vunpack.c.l.b16 %v48
  %v76 = vunpack.c.l.b16 %v49
  %v77 = vunpack.c.l.b16 %v50
  %v78 = vunpack.c.l.b16 %v51
  %v79 = vunpack.c.l.b16 %v52
  %v80 = vunpack.c.l.b16 %v53
  %v81 = vunpack.c.l.b16 %v54
  %v82 = vunpack.c.l.b16 %v55
  %v83 = vunpack.c.l.b16 %v56
  %v84 = vunpack.c.l.b16 %v57
  %v85 = vunpack.c.l.b16 %v58
  %v86 = vpack.c.b16 %v75, %v74
  %v87 = vpack.c.b16 %v77, %v76
  %v88 = vpack.c.b16 %v79, %v78
  %v89 = vpack.c.b16 %v81, %v80
  %v90 = vpack.c.b16 %v83, %v82
  %v91 = vpack.c.b16 %v85, %v84
  %vm98 = vcmask 785408
  %v100 = vsel %vm98, %v59, 0
  %102 = vmatprep.subr.bf16.mxu0 0
  %103 = vmatpush1.bf16.msra.mxu0 %v86
  %104 = vmatprep.subr.bf16.mxu0 0
  %105 = vmatpush1.bf16.msra.mxu0 %v87
  %106 = vmatprep.subr.bf16.mxu0 0
  %107 = vmatpush1.bf16.msra.mxu0 %v88
  %108 = vmatprep.subr.bf16.mxu0 0
  %109 = vmatpush1.bf16.msra.mxu0 %v89
  %110 = vmatprep.subr.bf16.mxu0 0
  %111 = vmatpush1.bf16.msra.mxu0 %v90
  %112 = vmatprep.subr.bf16.mxu0 0
  %113 = vmatpush1.bf16.msra.mxu0 %v91
  %114 = vmatprep.subr.bf16.mxu0 0
  %115 = vmatpush1.bf16.msra.mxu0 0
  %116 = vmatprep.subr.bf16.mxu0 0
  %117 = vmatpush1.bf16.msra.mxu0 0
  %118 = vmatprep.subr.bf16.mxu0 0
  %119 = vmatpush1.bf16.msra.mxu0 0
  %120 = vmatprep.subr.bf16.mxu0 0
  %121 = vmatpush1.bf16.msra.mxu0 0
  %122 = vmatprep.subr.bf16.mxu0 0
  %123 = vmatpush1.bf16.msra.mxu0 0
  %124 = vmatprep.subr.bf16.mxu0 0
  %125 = vmatpush1.bf16.msra.mxu0 0
  %126 = vmatprep.subr.bf16.mxu0 0
  %127 = vmatpush1.bf16.msra.mxu0 0
  %128 = vmatprep.subr.bf16.mxu0 0
  %129 = vmatpush1.bf16.msra.mxu0 0
  %130 = vmatprep.subr.bf16.mxu0 0
  %131 = vmatpush1.bf16.msra.mxu0 0
  %132 = vmatprep.subr.bf16.mxu0 0
  %133 = vmatpush1.bf16.msra.mxu0 0
  %134 = vmatprep.mubr.bf16.mxu0 0
  %135 = vmatmul.mubr.bf16.gmra.mrb[0].mxu0 %v100
  %v136 = vpop.f32.mrb[0].mxu0
  %v137 = vadd.f32 %v60, %v136
  %v138 = vpop.f32.mrb[0].mxu0
  %v139 = vpop.f32.mrb[0].mxu0
  %v140 = vadd.f32 %v61, %v139
  %v141 = vpop.f32.mrb[0].mxu0
  %142 = vdwg.mxu0
  %v143 = vld [vmem:[%s1] sm:$0xff]
  %v144 = vld [vmem:[%s1 + $0x8] sm:$0xff]
  %v145 = vld [vmem:[%s1 + $0x10] sm:$0xff]
  %v146 = vld [vmem:[%s1 + $0x18] sm:$0xff]
  %v147 = vld [vmem:[%s4] sm:$0xf]
  %v148 = vld [vmem:[%s4 + $0x4] sm:$0xf]
  %v149 = vld [vmem:[%s4 + $0x8] sm:$0xf]
  %v150 = vld [vmem:[%s4 + $0xc] sm:$0xf]
  %v151 = vpack.c.bf16 %v144, %v143
  %v152 = vpack.c.bf16 %v146, %v145
  %v157 = vunpack.c.l.b16 %v147
  %v158 = vunpack.c.l.b16 %v148
  %v159 = vunpack.c.l.b16 %v149
  %v160 = vunpack.c.l.b16 %v150
  %v161 = vpack.c.b16 %v158, %v157
  %v162 = vpack.c.b16 %v160, %v159
  %vm165 = vcmask 261120
  %v167 = vsel %vm165, %v151, 0
  %v170 = vsel %vm165, %v152, 0
  %172 = vmatprep.subr.bf16.mxu0 0
  %173 = vmatpush1.bf16.msra.mxu0 %v161
  %174 = vmatprep.subr.bf16.mxu0 0
  %175 = vmatpush1.bf16.msra.mxu0 %v162
  %176 = vmatprep.subr.bf16.mxu0 0
  %177 = vmatpush1.bf16.msra.mxu0 0
  %178 = vmatprep.subr.bf16.mxu0 0
  %179 = vmatpush1.bf16.msra.mxu0 0
  %180 = vmatprep.subr.bf16.mxu0 0
  %181 = vmatpush1.bf16.msra.mxu0 0
  %182 = vmatprep.subr.bf16.mxu0 0
  %183 = vmatpush1.bf16.msra.mxu0 0
  %184 = vmatprep.subr.bf16.mxu0 0
  %185 = vmatpush1.bf16.msra.mxu0 0
  %186 = vmatprep.subr.bf16.mxu0 0
  %187 = vmatpush1.bf16.msra.mxu0 0
  %188 = vmatprep.subr.bf16.mxu0 0
  %189 = vmatpush1.bf16.msra.mxu0 0
  %190 = vmatprep.subr.bf16.mxu0 0
  %191 = vmatpush1.bf16.msra.mxu0 0
  %192 = vmatprep.subr.bf16.mxu0 0
  %193 = vmatpush1.bf16.msra.mxu0 0
  %194 = vmatprep.subr.bf16.mxu0 0
  %195 = vmatpush1.bf16.msra.mxu0 0
  %196 = vmatprep.subr.bf16.mxu0 0
  %197 = vmatpush1.bf16.msra.mxu0 0
  %198 = vmatprep.subr.bf16.mxu0 0
  %199 = vmatpush1.bf16.msra.mxu0 0
  %200 = vmatprep.subr.bf16.mxu0 0
  %201 = vmatpush1.bf16.msra.mxu0 0
  %202 = vmatprep.subr.bf16.mxu0 0
  %203 = vmatpush1.bf16.msra.mxu0 0
  %204 = vmatprep.mubr.bf16.mxu0 0
  %205 = vmatmul.mubr.bf16.gmra.mrb[0].mxu0 %v167
  %v206 = vpop.f32.mrb[0].mxu0
  %v207 = vadd.f32 0.0, %v206
  %v208 = vpop.f32.mrb[0].mxu0
  %v209 = vpop.f32.mrb[0].mxu0
  %v210 = vadd.f32 0.0, %v209
  %v211 = vpop.f32.mrb[0].mxu0
  %212 = vmatprep.mubr.bf16.mxu0 0
  %213 = vmatmul.mubr.bf16.gmra.mrb[0].mxu0 %v170
  %v214 = vpop.f32.mrb[0].mxu0
  %v215 = vadd.f32 0.0, %v214
  %v216 = vpop.f32.mrb[0].mxu0
  %v217 = vpop.f32.mrb[0].mxu0
  %v218 = vadd.f32 0.0, %v217
  %v219 = vpop.f32.mrb[0].mxu0
  %220 = vdwg.mxu0
  %v221 = vld [vmem:[%s5] sm:$0xff]
  %v222 = vld [vmem:[%s5 + $0x8] sm:$0xff]
  %v223 = vadd.f32 %v137, %v221
  %v224 = vadd.f32 %v140, %v222
  %227 = vrot.lane.b32.xlu0 %v221, 96
  %v228 = vpop.permute.xlu0 %227
  %229 = vrot.lane.b32.xlu0 %v222, 96
  %v230 = vpop.permute.xlu0 %229
  %v233 = vadd.f32 %v137, %v228
  %v234 = vadd.f32 %v140, %v230
  %v235 = vld [vmem:[%s6] sm:$0xff]
  %v236 = vld [vmem:[%s6 + $0x8] sm:$0xff]
  %v237 = vld [vmem:[%s6 + $0x10] sm:$0xff]
  %v238 = vld [vmem:[%s6 + $0x18] sm:$0xff]
  %v239 = vld [vmem:[%s6 + $0x20] sm:$0xff]
  %v240 = vld [vmem:[%s6 + $0x28] sm:$0xff]
  %v241 = vld [vmem:[%s6 + $0x30] sm:$0xff]
  %v242 = vld [vmem:[%s6 + $0x38] sm:$0xff]
  %251 = vrot.lane.b32.xlu0 %v235, 32
  %v252 = vpop.permute.xlu0 %251
  %253 = vrot.lane.b32.xlu0 %v236, 32
  %v254 = vpop.permute.xlu0 %253
  %255 = vrot.lane.b32.xlu0 %v237, 32
  %v256 = vpop.permute.xlu0 %255
  %257 = vrot.lane.b32.xlu0 %v238, 32
  %v258 = vpop.permute.xlu0 %257
  %259 = vrot.lane.b32.xlu0 %v239, 32
  %v260 = vpop.permute.xlu0 %259
  %261 = vrot.lane.b32.xlu0 %v240, 32
  %v262 = vpop.permute.xlu0 %261
  %263 = vrot.lane.b32.xlu0 %v241, 32
  %v264 = vpop.permute.xlu0 %263
  %265 = vrot.lane.b32.xlu0 %v242, 32
  %v266 = vpop.permute.xlu0 %265
  %v275 = vmul.f32 %v137, %v252
  %v276 = vmul.f32 %v140, %v254
  %v277 = vmul.f32 %v137, %v256
  %v278 = vmul.f32 %v140, %v258
  %v279 = vmul.f32 %v137, %v260
  %v280 = vmul.f32 %v140, %v262
  %v281 = vmul.f32 %v137, %v264
  %v282 = vmul.f32 %v140, %v266
  %283 = vrot.lane.b32.xlu0 %v235, 64
  %v284 = vpop.permute.xlu0 %283
  %285 = vrot.lane.b32.xlu0 %v236, 64
  %v286 = vpop.permute.xlu0 %285
  %287 = vrot.lane.b32.xlu0 %v237, 64
  %v288 = vpop.permute.xlu0 %287
  %289 = vrot.lane.b32.xlu0 %v238, 64
  %v290 = vpop.permute.xlu0 %289
  %291 = vrot.lane.b32.xlu0 %v239, 64
  %v292 = vpop.permute.xlu0 %291
  %293 = vrot.lane.b32.xlu0 %v240, 64
  %v294 = vpop.permute.xlu0 %293
  %295 = vrot.lane.b32.xlu0 %v241, 64
  %v296 = vpop.permute.xlu0 %295
  %297 = vrot.lane.b32.xlu0 %v242, 64
  %v298 = vpop.permute.xlu0 %297
  %v307 = vmul.f32 %v137, %v284
  %v308 = vmul.f32 %v140, %v286
  %v309 = vmul.f32 %v137, %v288
  %v310 = vmul.f32 %v140, %v290
  %v311 = vmul.f32 %v137, %v292
  %v312 = vmul.f32 %v140, %v294
  %v313 = vmul.f32 %v137, %v296
  %v314 = vmul.f32 %v140, %v298
  %v315 = vld [vmem:[%s7] sm:$0xff]
  %v316 = vld [vmem:[%s7 + $0x8] sm:$0xff]
  %v317 = vld [vmem:[%s7 + $0x10] sm:$0xff]
  %v318 = vld [vmem:[%s7 + $0x18] sm:$0xff]
  %v319 = vld [vmem:[%s7 + $0x20] sm:$0xff]
  %v320 = vld [vmem:[%s7 + $0x28] sm:$0xff]
  %v321 = vld [vmem:[%s7 + $0x30] sm:$0xff]
  %v322 = vld [vmem:[%s7 + $0x38] sm:$0xff]
  %v323 = vld [vmem:[%s7 + $0x40] sm:$0xff]
  %v324 = vld [vmem:[%s7 + $0x48] sm:$0xff]
  %v325 = vld [vmem:[%s7 + $0x50] sm:$0xff]
  %v326 = vld [vmem:[%s7 + $0x58] sm:$0xff]
  %v327 = vld [vmem:[%s7 + $0x60] sm:$0xff]
  %v328 = vld [vmem:[%s7 + $0x68] sm:$0xff]
  %v329 = vld [vmem:[%s7 + $0x70] sm:$0xff]
  %v330 = vld [vmem:[%s7 + $0x78] sm:$0xff]
  %v331 = vmul.f32 %v207, %v315
  %v332 = vmul.f32 %v210, %v316
  %v333 = vmul.f32 %v215, %v317
  %v334 = vmul.f32 %v218, %v318
  %v335 = vmul.f32 %v207, %v319
  %v336 = vmul.f32 %v210, %v320
  %v337 = vmul.f32 %v215, %v321
  %v338 = vmul.f32 %v218, %v322
  %v339 = vmul.f32 %v207, %v323
  %v340 = vmul.f32 %v210, %v324
  %v341 = vmul.f32 %v215, %v325
  %v342 = vmul.f32 %v218, %v326
  %v343 = vmul.f32 %v207, %v327
  %v344 = vmul.f32 %v210, %v328
  %v345 = vmul.f32 %v215, %v329
  %v346 = vmul.f32 %v218, %v330
  %v347 = vpack.c.bf16 %v224, %v223
  %v348 = vpack.c.bf16 %v276, %v275
  %v349 = vpack.c.bf16 %v278, %v277
  %v350 = vpack.c.bf16 %v280, %v279
  %v351 = vpack.c.bf16 %v282, %v281
  %356 = vrot.lane.b32.xlu0 %v348, 96
  %v357 = vpop.permute.xlu0 %356
  %358 = vrot.lane.b32.xlu0 %v349, 96
  %v359 = vpop.permute.xlu0 %358
  %360 = vrot.lane.b32.xlu0 %v350, 96
  %v361 = vpop.permute.xlu0 %360
  %362 = vrot.lane.b32.xlu0 %v351, 96
  %v363 = vpop.permute.xlu0 %362
  %v365 = vsel %vm165, %v347, 0
  %v368 = vsel %vm165, %v357, 0
  %v371 = vsel %vm165, %v359, 0
  %v374 = vsel %vm165, %v361, 0
  %v377 = vsel %vm165, %v363, 0
  %379 = vmatprep.subr.bf16.mxu0 0
  %380 = vmatpush1.bf16.xpose.msra.mxu0 %v368
  %381 = vmatprep.subr.bf16.mxu0 0
  %382 = vmatpush1.bf16.xpose.msra.mxu0 %v371
  %383 = vmatprep.subr.bf16.mxu0 0
  %384 = vmatpush1.bf16.xpose.msra.mxu0 %v374
  %385 = vmatprep.subr.bf16.mxu0 0
  %386 = vmatpush1.bf16.xpose.msra.mxu0 %v377
  %387 = vmatprep.subr.bf16.mxu0 0
  %388 = vmatpush1.bf16.xpose.msra.mxu0 0
  %389 = vmatprep.subr.bf16.mxu0 0
  %390 = vmatpush1.bf16.xpose.msra.mxu0 0
  %391 = vmatprep.subr.bf16.mxu0 0
  %392 = vmatpush1.bf16.xpose.msra.mxu0 0
  %393 = vmatprep.subr.bf16.mxu0 0
  %394 = vmatpush1.bf16.xpose.msra.mxu0 0
  %395 = vmatprep.subr.bf16.mxu0 0
  %396 = vmatpush1.bf16.xpose.msra.mxu0 0
  %397 = vmatprep.subr.bf16.mxu0 0
  %398 = vmatpush1.bf16.xpose.msra.mxu0 0
  %399 = vmatprep.subr.bf16.mxu0 0
  %400 = vmatpush1.bf16.xpose.msra.mxu0 0
  %401 = vmatprep.subr.bf16.mxu0 0
  %402 = vmatpush1.bf16.xpose.msra.mxu0 0
  %403 = vmatprep.subr.bf16.mxu0 0
  %404 = vmatpush1.bf16.xpose.msra.mxu0 0
  %405 = vmatprep.subr.bf16.mxu0 0
  %406 = vmatpush1.bf16.xpose.msra.mxu0 0
  %407 = vmatprep.subr.bf16.mxu0 0
  %408 = vmatpush1.bf16.xpose.msra.mxu0 0
  %409 = vmatprep.subr.bf16.mxu0 0
  %410 = vmatpush1.bf16.xpose.msra.mxu0 0
  %411 = vmatprep.mubr.bf16.mxu0 0
  %412 = vmatmul.mubr.bf16.gmra.mrb[0].mxu0 %v365
  %v413 = vpop.f32.mrb[0].mxu0
  %v414 = vadd.f32 0.0, %v413
  %v415 = vpop.f32.mrb[0].mxu0
  %v416 = vpop.f32.mrb[0].mxu0
  %v417 = vadd.f32 0.0, %v416
  %v418 = vpop.f32.mrb[0].mxu0
  %419 = vdwg.mxu0
  %v420 = vpack.c.bf16 %v234, %v233
  %v421 = vpack.c.bf16 %v332, %v331
  %v422 = vpack.c.bf16 %v334, %v333
  %v423 = vpack.c.bf16 %v336, %v335
  %v424 = vpack.c.bf16 %v338, %v337
  %v425 = vpack.c.bf16 %v340, %v339
  %v426 = vpack.c.bf16 %v342, %v341
  %v427 = vpack.c.bf16 %v344, %v343
  %v428 = vpack.c.bf16 %v346, %v345
  %v430 = vsel %vm165, %v420, 0
  %v433 = vsel %vm165, %v421, 0
  %v436 = vsel %vm165, %v422, 0
  %v439 = vsel %vm165, %v423, 0
  %v442 = vsel %vm165, %v424, 0
  %v445 = vsel %vm165, %v425, 0
  %v448 = vsel %vm165, %v426, 0
  %v451 = vsel %vm165, %v427, 0
  %v454 = vsel %vm165, %v428, 0
  %456 = vmatprep.subr.bf16.mxu0 0
  %457 = vmatpush1.bf16.xpose.msra.mxu0 %v433
  %458 = vmatprep.subr.bf16.mxu0 0
  %459 = vmatpush1.bf16.xpose.msra.mxu0 %v436
  %460 = vmatprep.subr.bf16.mxu0 0
  %461 = vmatpush1.bf16.xpose.msra.mxu0 %v439
  %462 = vmatprep.subr.bf16.mxu0 0
  %463 = vmatpush1.bf16.xpose.msra.mxu0 %v442
  %464 = vmatprep.subr.bf16.mxu0 0
  %465 = vmatpush1.bf16.xpose.msra.mxu0 %v445
  %466 = vmatprep.subr.bf16.mxu0 0
  %467 = vmatpush1.bf16.xpose.msra.mxu0 %v448
  %468 = vmatprep.subr.bf16.mxu0 0
  %469 = vmatpush1.bf16.xpose.msra.mxu0 %v451
  %470 = vmatprep.subr.bf16.mxu0 0
  %471 = vmatpush1.bf16.xpose.msra.mxu0 %v454
  %472 = vmatprep.subr.bf16.mxu0 0
  %473 = vmatpush1.bf16.xpose.msra.mxu0 0
  %474 = vmatprep.subr.bf16.mxu0 0
  %475 = vmatpush1.bf16.xpose.msra.mxu0 0
  %476 = vmatprep.subr.bf16.mxu0 0
  %477 = vmatpush1.bf16.xpose.msra.mxu0 0
  %478 = vmatprep.subr.bf16.mxu0 0
  %479 = vmatpush1.bf16.xpose.msra.mxu0 0
  %480 = vmatprep.subr.bf16.mxu0 0
  %481 = vmatpush1.bf16.xpose.msra.mxu0 0
  %482 = vmatprep.subr.bf16.mxu0 0
  %483 = vmatpush1.bf16.xpose.msra.mxu0 0
  %484 = vmatprep.subr.bf16.mxu0 0
  %485 = vmatpush1.bf16.xpose.msra.mxu0 0
  %486 = vmatprep.subr.bf16.mxu0 0
  %487 = vmatpush1.bf16.xpose.msra.mxu0 0
  %488 = vmatprep.mubr.bf16.mxu0 0
  %489 = vmatmul.mubr.bf16.gmra.mrb[0].mxu0 %v430
  %v490 = vpop.f32.mrb[0].mxu0
  %v491 = vadd.f32 0.0, %v490
  %v492 = vpop.f32.mrb[0].mxu0
  %v493 = vpop.f32.mrb[0].mxu0
  %v494 = vadd.f32 0.0, %v493
  %v495 = vpop.f32.mrb[0].mxu0
  %496 = vdwg.mxu0
  %v497 = vld [vmem:[%s8] sm:$0xff]
  %v498 = vld [vmem:[%s8 + $0x8] sm:$0xff]
  %v499 = vld [vmem:[%s8 + $0x10] sm:$0xff]
  %v500 = vld [vmem:[%s8 + $0x18] sm:$0xff]
  %v501 = vld [vmem:[%s8 + $0x20] sm:$0xff]
  %v502 = vld [vmem:[%s8 + $0x28] sm:$0xff]
  %v503 = vld [vmem:[%s8 + $0x30] sm:$0xff]
  %v504 = vld [vmem:[%s8 + $0x38] sm:$0xff]
  %v505 = vld [vmem:[%s8 + $0x40] sm:$0xff]
  %v506 = vld [vmem:[%s8 + $0x48] sm:$0xff]
  %v507 = vld [vmem:[%s8 + $0x50] sm:$0xff]
  %v508 = vld [vmem:[%s8 + $0x58] sm:$0xff]
  %v509 = vld [vmem:[%s8 + $0x60] sm:$0xff]
  %v510 = vld [vmem:[%s8 + $0x68] sm:$0xff]
  %v511 = vld [vmem:[%s8 + $0x70] sm:$0xff]
  %v512 = vld [vmem:[%s8 + $0x78] sm:$0xff]
  %v513 = vld [vmem:[%s8 + $0x80] sm:$0xff]
  %v514 = vld [vmem:[%s8 + $0x88] sm:$0xff]
  %v515 = vld [vmem:[%s8 + $0x90] sm:$0xff]
  %v516 = vld [vmem:[%s8 + $0x98] sm:$0xff]
  %v517 = vld [vmem:[%s8 + $0xa0] sm:$0xff]
  %v518 = vld [vmem:[%s8 + $0xa8] sm:$0xff]
  %v519 = vld [vmem:[%s8 + $0xb0] sm:$0xff]
  %v520 = vld [vmem:[%s8 + $0xb8] sm:$0xff]
  %v521 = vld [vmem:[%s8 + $0xc0] sm:$0xff]
  %v522 = vld [vmem:[%s8 + $0xc8] sm:$0xff]
  %v523 = vld [vmem:[%s8 + $0xd0] sm:$0xff]
  %v524 = vld [vmem:[%s8 + $0xd8] sm:$0xff]
  %v525 = vld [vmem:[%s8 + $0xe0] sm:$0xff]
  %v526 = vld [vmem:[%s8 + $0xe8] sm:$0xff]
  %v527 = vld [vmem:[%s8 + $0xf0] sm:$0xff]
  %v528 = vld [vmem:[%s8 + $0xf8] sm:$0xff]
  %v529 = vpack.c.bf16 %v494, %v491
  %v562 = vunpack.c.l.b16 %v497
  %v563 = vunpack.c.h.b16 %v497
  %v564 = vunpack.c.l.b16 %v498
  %v565 = vunpack.c.h.b16 %v498
  %v566 = vunpack.c.l.b16 %v499
  %v567 = vunpack.c.h.b16 %v499
  %v568 = vunpack.c.l.b16 %v500
  %v569 = vunpack.c.h.b16 %v500
  %v570 = vunpack.c.l.b16 %v501
  %v571 = vunpack.c.h.b16 %v501
  %v572 = vunpack.c.l.b16 %v502
  %v573 = vunpack.c.h.b16 %v502
  %v574 = vunpack.c.l.b16 %v503
  %v575 = vunpack.c.h.b16 %v503
  %v576 = vunpack.c.l.b16 %v504
  %v577 = vunpack.c.h.b16 %v504
  %v578 = vunpack.c.l.b16 %v505
  %v579 = vunpack.c.h.b16 %v505
  %v580 = vunpack.c.l.b16 %v506
  %v581 = vunpack.c.h.b16 %v506
  %v582 = vunpack.c.l.b16 %v507
  %v583 = vunpack.c.h.b16 %v507
  %v584 = vunpack.c.l.b16 %v508
  %v585 = vunpack.c.h.b16 %v508
  %v586 = vunpack.c.l.b16 %v509
  %v587 = vunpack.c.h.b16 %v509
  %v588 = vunpack.c.l.b16 %v510
  %v589 = vunpack.c.h.b16 %v510
  %v590 = vunpack.c.l.b16 %v511
  %v591 = vunpack.c.h.b16 %v511
  %v592 = vunpack.c.l.b16 %v512
  %v593 = vunpack.c.h.b16 %v512
  %v594 = vunpack.c.l.b16 %v513
  %v595 = vunpack.c.h.b16 %v513
  %v596 = vunpack.c.l.b16 %v514
  %v597 = vunpack.c.h.b16 %v514
  %v598 = vunpack.c.l.b16 %v515
  %v599 = vunpack.c.h.b16 %v515
  %v600 = vunpack.c.l.b16 %v516
  %v601 = vunpack.c.h.b16 %v516
  %v602 = vunpack.c.l.b16 %v517
  %v603 = vunpack.c.h.b16 %v517
  %v604 = vunpack.c.l.b16 %v518
  %v605 = vunpack.c.h.b16 %v518
  %v606 = vunpack.c.l.b16 %v519
  %v607 = vunpack.c.h.b16 %v519
  %v608 = vunpack.c.l.b16 %v520
  %v609 = vunpack.c.h.b16 %v520
  %v610 = vunpack.c.l.b16 %v521
  %v611 = vunpack.c.h.b16 %v521
  %v612 = vunpack.c.l.b16 %v522
  %v613 = vunpack.c.h.b16 %v522
  %v614 = vunpack.c.l.b16 %v523
  %v615 = vunpack.c.h.b16 %v523
  %v616 = vunpack.c.l.b16 %v524
  %v617 = vunpack.c.h.b16 %v524
  %v618 = vunpack.c.l.b16 %v525
  %v619 = vunpack.c.h.b16 %v525
  %v620 = vunpack.c.l.b16 %v526
  %v621 = vunpack.c.h.b16 %v526
  %v622 = vunpack.c.l.b16 %v527
  %v623 = vunpack.c.h.b16 %v527
  %v624 = vunpack.c.l.b16 %v528
  %v625 = vunpack.c.h.b16 %v528
  %v626 = vpack.c.b16 %v566, %v562
  %v627 = vpack.c.b16 %v567, %v563
  %v628 = vpack.c.b16 %v568, %v564
  %v629 = vpack.c.b16 %v569, %v565
  %v630 = vpack.c.b16 %v574, %v570
  %v631 = vpack.c.b16 %v575, %v571
  %v632 = vpack.c.b16 %v576, %v572
  %v633 = vpack.c.b16 %v577, %v573
  %v634 = vpack.c.b16 %v582, %v578
  %v635 = vpack.c.b16 %v583, %v579
  %v636 = vpack.c.b16 %v584, %v580
  %v637 = vpack.c.b16 %v585, %v581
  %v638 = vpack.c.b16 %v590, %v586
  %v639 = vpack.c.b16 %v591, %v587
  %v640 = vpack.c.b16 %v592, %v588
  %v641 = vpack.c.b16 %v593, %v589
  %v642 = vpack.c.b16 %v598, %v594
  %v643 = vpack.c.b16 %v599, %v595
  %v644 = vpack.c.b16 %v600, %v596
  %v645 = vpack.c.b16 %v601, %v597
  %v646 = vpack.c.b16 %v606, %v602
  %v647 = vpack.c.b16 %v607, %v603
  %v648 = vpack.c.b16 %v608, %v604
  %v649 = vpack.c.b16 %v609, %v605
  %v650 = vpack.c.b16 %v614, %v610
  %v651 = vpack.c.b16 %v615, %v611
  %v652 = vpack.c.b16 %v616, %v612
  %v653 = vpack.c.b16 %v617, %v613
  %v654 = vpack.c.b16 %v622, %v618
  %v655 = vpack.c.b16 %v623, %v619
  %v656 = vpack.c.b16 %v624, %v620
  %v657 = vpack.c.b16 %v625, %v621
  %690 = vmatprep.subr.bf16.mxu0 %v627
  %691 = vmatpush1.bf16.msra.mxu0 %v626
  %692 = vmatprep.subr.bf16.mxu0 %v631
  %693 = vmatpush1.bf16.msra.mxu0 %v630
  %694 = vmatprep.subr.bf16.mxu0 %v635
  %695 = vmatpush1.bf16.msra.mxu0 %v634
  %696 = vmatprep.subr.bf16.mxu0 %v639
  %697 = vmatpush1.bf16.msra.mxu0 %v638
  %698 = vmatprep.subr.bf16.mxu0 %v643
  %699 = vmatpush1.bf16.msra.mxu0 %v642
  %700 = vmatprep.subr.bf16.mxu0 %v647
  %701 = vmatpush1.bf16.msra.mxu0 %v646
  %702 = vmatprep.subr.bf16.mxu0 %v651
  %703 = vmatpush1.bf16.msra.mxu0 %v650
  %704 = vmatprep.subr.bf16.mxu0 %v655
  %705 = vmatpush1.bf16.msra.mxu0 %v654
  %706 = vmatprep.subr.bf16.mxu0 0
  %707 = vmatpush1.bf16.msra.mxu0 0
  %708 = vmatprep.subr.bf16.mxu0 0
  %709 = vmatpush1.bf16.msra.mxu0 0
  %710 = vmatprep.subr.bf16.mxu0 0
  %711 = vmatpush1.bf16.msra.mxu0 0
  %712 = vmatprep.subr.bf16.mxu0 0
  %713 = vmatpush1.bf16.msra.mxu0 0
  %714 = vmatprep.subr.bf16.mxu0 0
  %715 = vmatpush1.bf16.msra.mxu0 0
  %716 = vmatprep.subr.bf16.mxu0 0
  %717 = vmatpush1.bf16.msra.mxu0 0
  %718 = vmatprep.subr.bf16.mxu0 0
  %719 = vmatpush1.bf16.msra.mxu0 0
  %720 = vmatprep.subr.bf16.mxu0 0
  %721 = vmatpush1.bf16.msra.mxu0 0
  %722 = vmatprep.mubr.bf16.mxu0 0
  %723 = vmatmul.mubr.bf16.gmra.mrb[0].mxu0 %v529
  %v724 = vpop.f32.mrb[0].mxu0
  %v725 = vadd.f32 0.0, %v724
  %v726 = vpop.f32.mrb[0].mxu0
  %v727 = vadd.f32 0.0, %v726
  %v728 = vpop.f32.mrb[0].mxu0
  %v729 = vadd.f32 0.0, %v728
  %v730 = vpop.f32.mrb[0].mxu0
  %v731 = vadd.f32 0.0, %v730
  %732 = vdwg.mxu0
  %733 = vmatprep.subr.bf16.mxu0 %v629
  %734 = vmatpush1.bf16.msra.mxu0 %v628
  %735 = vmatprep.subr.bf16.mxu0 %v633
  %736 = vmatpush1.bf16.msra.mxu0 %v632
  %737 = vmatprep.subr.bf16.mxu0 %v637
  %738 = vmatpush1.bf16.msra.mxu0 %v636
  %739 = vmatprep.subr.bf16.mxu0 %v641
  %740 = vmatpush1.bf16.msra.mxu0 %v640
  %741 = vmatprep.subr.bf16.mxu0 %v645
  %742 = vmatpush1.bf16.msra.mxu0 %v644
  %743 = vmatprep.subr.bf16.mxu0 %v649
  %744 = vmatpush1.bf16.msra.mxu0 %v648
  %745 = vmatprep.subr.bf16.mxu0 %v653
  %746 = vmatpush1.bf16.msra.mxu0 %v652
  %747 = vmatprep.subr.bf16.mxu0 %v657
  %748 = vmatpush1.bf16.msra.mxu0 %v656
  %749 = vmatprep.subr.bf16.mxu0 0
  %750 = vmatpush1.bf16.msra.mxu0 0
  %751 = vmatprep.subr.bf16.mxu0 0
  %752 = vmatpush1.bf16.msra.mxu0 0
  %753 = vmatprep.subr.bf16.mxu0 0
  %754 = vmatpush1.bf16.msra.mxu0 0
  %755 = vmatprep.subr.bf16.mxu0 0
  %756 = vmatpush1.bf16.msra.mxu0 0
  %757 = vmatprep.subr.bf16.mxu0 0
  %758 = vmatpush1.bf16.msra.mxu0 0
  %759 = vmatprep.subr.bf16.mxu0 0
  %760 = vmatpush1.bf16.msra.mxu0 0
  %761 = vmatprep.subr.bf16.mxu0 0
  %762 = vmatpush1.bf16.msra.mxu0 0
  %763 = vmatprep.subr.bf16.mxu0 0
  %764 = vmatpush1.bf16.msra.mxu0 0
  %765 = vmatprep.mubr.bf16.mxu0 0
  %766 = vmatmul.mubr.bf16.gmra.mrb[0].mxu0 %v529
  %v767 = vpop.f32.mrb[0].mxu0
  %v768 = vadd.f32 0.0, %v767
  %v769 = vpop.f32.mrb[0].mxu0
  %v770 = vadd.f32 0.0, %v769
  %v771 = vpop.f32.mrb[0].mxu0
  %v772 = vadd.f32 0.0, %v771
  %v773 = vpop.f32.mrb[0].mxu0
  %v774 = vadd.f32 0.0, %v773
  %775 = vdwg.mxu0
  %v776 = vlaneseq
  %v777 = vshrl.u32 %v776, 7
  %v778 = vadd.s32 %v777, 8
  %vm779 = vcmp.lt.s32.totalorder %v777, 0
  %v780 = vsub.s32 0, %v777
  %v781 = vsel %vm779, %v780, %v777
  %v782 = vshrl.u32 %v781, 3
  %v783 = vand.u32 %v781, 7
  %v784 = vsub.s32 0, %v783
  %v785 = vsel %vm779, %v784, %v783
  %vm786 = vcmp.lt.s32.totalorder %v778, 0
  %v787 = vsub.s32 0, %v778
  %v788 = vsel %vm786, %v787, %v778
  %v789 = vshrl.u32 %v788, 3
  %v790 = vand.u32 %v788, 7
  %v791 = vsub.s32 0, %v790
  %v792 = vsel %vm786, %v791, %v790
  %vm793 = vcmp.ne.s32.totalorder %v785, 0
  %vm794 = vcmp.ne.s32.totalorder %v792, 0
  %vm795 = vcmp.lt.s32.totalorder %v785, 0
  %vm796 = vcmp.lt.s32.totalorder %v792, 0
  %vm797 = vmand %vm795, %vm793
  %vm798 = vmand %vm796, %vm794
  %v799 = vadd.s32 %v785, 8
  %v800 = vadd.s32 %v792, 8
  %v801 = vsel %vm797, %v799, %v785
  %v802 = vsel %vm798, %v800, %v792
  %vm803 = vcmp.eq.s32.totalorder %v801, 0
  %vm804 = vcmp.eq.s32.totalorder %v802, 0
  %v805 = vsel %vm803, 1, 0
  %v806 = vsel %vm804, 1, 0
  %v807 = vcvt.s32.f32 %v805
  %v808 = vcvt.s32.f32 %v806
  %v809 = vmul.f32 %v725, %v807
  %v810 = vmul.f32 %v729, %v808
  %vm811 = vcmp.eq.s32.totalorder %v801, 1
  %vm812 = vcmp.eq.s32.totalorder %v802, 1
  %v813 = vsel %vm811, 1, 0
  %v814 = vsel %vm812, 1, 0
  %v815 = vcvt.s32.f32 %v813
  %v816 = vcvt.s32.f32 %v814
  %v817 = vmul.f32 %v725, %v815
  %v818 = vmul.f32 %v729, %v816
  %vm819 = vcmp.eq.s32.totalorder %v801, 2
  %vm820 = vcmp.eq.s32.totalorder %v802, 2
  %v821 = vsel %vm819, 1, 0
  %v822 = vsel %vm820, 1, 0
  %v823 = vcvt.s32.f32 %v821
  %v824 = vcvt.s32.f32 %v822
  %v825 = vmul.f32 %v727, %v823
  %v826 = vmul.f32 %v731, %v824
  %vm827 = vcmp.eq.s32.totalorder %v801, 3
  %vm828 = vcmp.eq.s32.totalorder %v802, 3
  %v829 = vsel %vm827, 1, 0
  %v830 = vsel %vm828, 1, 0
  %v831 = vcvt.s32.f32 %v829
  %v832 = vcvt.s32.f32 %v830
  %v833 = vmul.f32 %v727, %v831
  %v834 = vmul.f32 %v731, %v832
  %vm835 = vcmp.eq.s32.totalorder %v801, 4
  %vm836 = vcmp.eq.s32.totalorder %v802, 4
  %v837 = vsel %vm835, 1, 0
  %v838 = vsel %vm836, 1, 0
  %v839 = vcvt.s32.f32 %v837
  %v840 = vcvt.s32.f32 %v838
  %v841 = vmul.f32 %v768, %v839
  %v842 = vmul.f32 %v772, %v840
  %vm843 = vcmp.eq.s32.totalorder %v801, 5
  %vm844 = vcmp.eq.s32.totalorder %v802, 5
  %v845 = vsel %vm843, 1, 0
  %v846 = vsel %vm844, 1, 0
  %v847 = vcvt.s32.f32 %v845
  %v848 = vcvt.s32.f32 %v846
  %v849 = vmul.f32 %v768, %v847
  %v850 = vmul.f32 %v772, %v848
  %vm851 = vcmp.eq.s32.totalorder %v801, 6
  %vm852 = vcmp.eq.s32.totalorder %v802, 6
  %v853 = vsel %vm851, 1, 0
  %v854 = vsel %vm852, 1, 0
  %v855 = vcvt.s32.f32 %v853
  %v856 = vcvt.s32.f32 %v854
  %v857 = vmul.f32 %v770, %v855
  %v858 = vmul.f32 %v774, %v856
  %vm859 = vcmp.eq.s32.totalorder %v801, 7
  %vm860 = vcmp.eq.s32.totalorder %v802, 7
  %v861 = vsel %vm859, 1, 0
  %v862 = vsel %vm860, 1, 0
  %v863 = vcvt.s32.f32 %v861
  %v864 = vcvt.s32.f32 %v862
  %v865 = vmul.f32 %v770, %v863
  %v866 = vmul.f32 %v774, %v864
  %869 = vrot.lane.b32.xlu0 %v817, 64
  %v870 = vpop.permute.xlu0 %869
  %871 = vrot.lane.b32.xlu0 %v818, 64
  %v872 = vpop.permute.xlu0 %871
  %v875 = vadd.f32 %v809, %v870
  %v876 = vadd.f32 %v810, %v872
  %879 = vrot.lane.b32.xlu0 %v833, 64
  %v880 = vpop.permute.xlu0 %879
  %881 = vrot.lane.b32.xlu0 %v834, 64
  %v882 = vpop.permute.xlu0 %881
  %v885 = vadd.f32 %v825, %v880
  %v886 = vadd.f32 %v826, %v882
  %889 = vrot.lane.b32.xlu0 %v849, 64
  %v890 = vpop.permute.xlu0 %889
  %891 = vrot.lane.b32.xlu0 %v850, 64
  %v892 = vpop.permute.xlu0 %891
  %v895 = vadd.f32 %v841, %v890
  %v896 = vadd.f32 %v842, %v892
  %899 = vrot.lane.b32.xlu0 %v865, 64
  %v900 = vpop.permute.xlu0 %899
  %901 = vrot.lane.b32.xlu0 %v866, 64
  %v902 = vpop.permute.xlu0 %901
  %v905 = vadd.f32 %v857, %v900
  %v906 = vadd.f32 %v858, %v902
  %v907 = vadd.f32 %v875, %v885
  %v908 = vadd.f32 %v876, %v886
  %v909 = vadd.f32 %v895, %v905
  %v910 = vadd.f32 %v896, %v906
  %v911 = vadd.f32 %v907, %v909
  %v912 = vadd.f32 %v908, %v910
  %v913 = vadd.f32 %v414, %v911
  %v914 = vadd.f32 %v417, %v912
  %v915 = vmul.f32 %v913, 0.17677669
  %v916 = vmul.f32 %v914, 0.17677669
  %vm917 = vcmask 523264
  %v918 = vsel %vm917, %v915, -inf
  %919 = vmax.xlane.f32.xlu0 %v918
  %v920 = vpop.xlane.xlu0 %919
  %v921 = vsel %vm917, %v916, -inf
  %922 = vmax.xlane.f32.xlu0 %v921
  %v923 = vpop.xlane.xlu0 %922
  %v924 = vsub.f32 %v915, %v920
  %v925 = vsub.f32 %v916, %v923
  %v926 = vmul.f32 %v924, 1.442695
  %v927 = vpow.pop %v926
  %v928 = vmul.f32 %v925, 1.442695
  %v929 = vpow.pop %v928
  %v930 = vld [vmem:[%s9] sm:$0xf]
  %v931 = vld [vmem:[%s9 + $0x4] sm:$0xf]
  %v932 = vld [vmem:[%s9 + $0x8] sm:$0xf]
  %v933 = vld [vmem:[%s9 + $0xc] sm:$0xf]
  %v934 = vld [vmem:[%s9 + $0x10] sm:$0xf]
  %v935 = vld [vmem:[%s9 + $0x14] sm:$0xf]
  %v936 = vld [vmem:[%s9 + $0x18] sm:$0xf]
  %v937 = vld [vmem:[%s9 + $0x1c] sm:$0xf]
  %v938 = vpack.c.bf16 %v929, %v927
  %v947 = vunpack.c.l.b16 %v930
  %v948 = vunpack.c.l.b16 %v931
  %v949 = vunpack.c.l.b16 %v932
  %v950 = vunpack.c.l.b16 %v933
  %v951 = vunpack.c.l.b16 %v934
  %v952 = vunpack.c.l.b16 %v935
  %v953 = vunpack.c.l.b16 %v936
  %v954 = vunpack.c.l.b16 %v937
  %v955 = vpack.c.b16 %v948, %v947
  %v956 = vpack.c.b16 %v950, %v949
  %v957 = vpack.c.b16 %v952, %v951
  %v958 = vpack.c.b16 %v954, %v953
  %v964 = vsel %vm917, %v938, 0
  %966 = vmatprep.subr.bf16.mxu0 0
  %967 = vmatpush1.bf16.msra.mxu0 %v955
  %968 = vmatprep.subr.bf16.mxu0 0
  %969 = vmatpush1.bf16.msra.mxu0 %v956
  %970 = vmatprep.subr.bf16.mxu0 0
  %971 = vmatpush1.bf16.msra.mxu0 %v957
  %972 = vmatprep.subr.bf16.mxu0 0
  %973 = vmatpush1.bf16.msra.mxu0 %v958
  %974 = vmatprep.subr.bf16.mxu0 0
  %975 = vmatpush1.bf16.msra.mxu0 0
  %976 = vmatprep.subr.bf16.mxu0 0
  %977 = vmatpush1.bf16.msra.mxu0 0
  %978 = vmatprep.subr.bf16.mxu0 0
  %979 = vmatpush1.bf16.msra.mxu0 0
  %980 = vmatprep.subr.bf16.mxu0 0
  %981 = vmatpush1.bf16.msra.mxu0 0
  %982 = vmatprep.subr.bf16.mxu0 0
  %983 = vmatpush1.bf16.msra.mxu0 0
  %984 = vmatprep.subr.bf16.mxu0 0
  %985 = vmatpush1.bf16.msra.mxu0 0
  %986 = vmatprep.subr.bf16.mxu0 0
  %987 = vmatpush1.bf16.msra.mxu0 0
  %988 = vmatprep.subr.bf16.mxu0 0
  %989 = vmatpush1.bf16.msra.mxu0 0
  %990 = vmatprep.subr.bf16.mxu0 0
  %991 = vmatpush1.bf16.msra.mxu0 0
  %992 = vmatprep.subr.bf16.mxu0 0
  %993 = vmatpush1.bf16.msra.mxu0 0
  %994 = vmatprep.subr.bf16.mxu0 0
  %995 = vmatpush1.bf16.msra.mxu0 0
  %996 = vmatprep.subr.bf16.mxu0 0
  %997 = vmatpush1.bf16.msra.mxu0 0
  %998 = vmatprep.mubr.bf16.mxu0 0
  %999 = vmatmul.mubr.bf16.gmra.mrb[0].mxu0 %v964
  %v1000 = vpop.f32.mrb[0].mxu0
  %v1001 = vadd.f32 0.0, %v1000
  %v1002 = vpop.f32.mrb[0].mxu0
  %v1003 = vpop.f32.mrb[0].mxu0
  %v1004 = vadd.f32 0.0, %v1003
  %v1005 = vpop.f32.mrb[0].mxu0
  %1006 = vdwg.mxu0
  %v1007 = vrcp.pop %v1001
  %v1008 = vrcp.pop %v1004
  %v1009 = vmul.f32 %v927, %v1007
  %v1010 = vmul.f32 %v929, %v1008
  %v1011 = vld [vmem:[%s10] sm:$0xff]
  %v1012 = vld [vmem:[%s10 + $0x8] sm:$0xff]
  %v1013 = vmul.f32 %v1009, %v1011
  %v1014 = vmul.f32 %v1010, %v1012
  %v1015 = vpack.c.bf16 %v1014, %v1013
  %v1016 = vpack.c.bf16 %v308, %v307
  %v1017 = vpack.c.bf16 %v310, %v309
  %v1018 = vpack.c.bf16 %v312, %v311
  %v1019 = vpack.c.bf16 %v314, %v313
  %1024 = vrot.lane.b32.xlu0 %v1016, 64
  %v1025 = vpop.permute.xlu0 %1024
  %1026 = vrot.lane.b32.xlu0 %v1017, 64
  %v1027 = vpop.permute.xlu0 %1026
  %1028 = vrot.lane.b32.xlu0 %v1018, 64
  %v1029 = vpop.permute.xlu0 %1028
  %1030 = vrot.lane.b32.xlu0 %v1019, 64
  %v1031 = vpop.permute.xlu0 %1030
  %v1037 = vsel %vm917, %v1015, 0
  %1039 = vmatprep.subr.bf16.mxu0 0
  %1040 = vmatpush1.bf16.msra.mxu0 %v1025
  %1041 = vmatprep.subr.bf16.mxu0 0
  %1042 = vmatpush1.bf16.msra.mxu0 %v1027
  %1043 = vmatprep.subr.bf16.mxu0 0
  %1044 = vmatpush1.bf16.msra.mxu0 %v1029
  %1045 = vmatprep.subr.bf16.mxu0 0
  %1046 = vmatpush1.bf16.msra.mxu0 %v1031
  %1047 = vmatprep.subr.bf16.mxu0 0
  %1048 = vmatpush1.bf16.msra.mxu0 0
  %1049 = vmatprep.subr.bf16.mxu0 0
  %1050 = vmatpush1.bf16.msra.mxu0 0
  %1051 = vmatprep.subr.bf16.mxu0 0
  %1052 = vmatpush1.bf16.msra.mxu0 0
  %1053 = vmatprep.subr.bf16.mxu0 0
  %1054 = vmatpush1.bf16.msra.mxu0 0
  %1055 = vmatprep.subr.bf16.mxu0 0
  %1056 = vmatpush1.bf16.msra.mxu0 0
  %1057 = vmatprep.subr.bf16.mxu0 0
  %1058 = vmatpush1.bf16.msra.mxu0 0
  %1059 = vmatprep.subr.bf16.mxu0 0
  %1060 = vmatpush1.bf16.msra.mxu0 0
  %1061 = vmatprep.subr.bf16.mxu0 0
  %1062 = vmatpush1.bf16.msra.mxu0 0
  %1063 = vmatprep.subr.bf16.mxu0 0
  %1064 = vmatpush1.bf16.msra.mxu0 0
  %1065 = vmatprep.subr.bf16.mxu0 0
  %1066 = vmatpush1.bf16.msra.mxu0 0
  %1067 = vmatprep.subr.bf16.mxu0 0
  %1068 = vmatpush1.bf16.msra.mxu0 0
  %1069 = vmatprep.subr.bf16.mxu0 0
  %1070 = vmatpush1.bf16.msra.mxu0 0
  %1071 = vmatprep.mubr.bf16.mxu0 0
  %1072 = vmatmul.mubr.bf16.gmra.mrb[0].mxu0 %v1037
  %v1073 = vpop.f32.mrb[0].mxu0
  %v1074 = vadd.f32 0.0, %v1073
  %v1075 = vpop.f32.mrb[0].mxu0
  %v1076 = vpop.f32.mrb[0].mxu0
  %v1077 = vadd.f32 0.0, %v1076
  %v1078 = vpop.f32.mrb[0].mxu0
  %1079 = vdwg.mxu0
  %v1080 = vld [vmem:[%s11] sm:$0xf]
  %v1081 = vld [vmem:[%s11 + $0x4] sm:$0xf]
  %v1082 = vld [vmem:[%s11 + $0x8] sm:$0xf]
  %v1083 = vld [vmem:[%s11 + $0xc] sm:$0xf]
  %v1084 = vpack.c.bf16 %v1077, %v1074
  %v1085 = vld [vmem:[%s12] sm:$0xff]
  %v1086 = vld [vmem:[%s12 + $0x8] sm:$0xff]
  %v1091 = vunpack.c.l.b16 %v1080
  %v1092 = vunpack.c.l.b16 %v1081
  %v1093 = vunpack.c.l.b16 %v1082
  %v1094 = vunpack.c.l.b16 %v1083
  %v1095 = vpack.c.b16 %v1092, %v1091
  %v1096 = vpack.c.b16 %v1094, %v1093
  %v1100 = vsel %vm165, %v1084, 0
  %1102 = vmatprep.subr.bf16.mxu0 0
  %1103 = vmatpush1.bf16.msra.mxu0 %v1095
  %1104 = vmatprep.subr.bf16.mxu0 0
  %1105 = vmatpush1.bf16.msra.mxu0 %v1096
  %1106 = vmatprep.subr.bf16.mxu0 0
  %1107 = vmatpush1.bf16.msra.mxu0 0
  %1108 = vmatprep.subr.bf16.mxu0 0
  %1109 = vmatpush1.bf16.msra.mxu0 0
  %1110 = vmatprep.subr.bf16.mxu0 0
  %1111 = vmatpush1.bf16.msra.mxu0 0
  %1112 = vmatprep.subr.bf16.mxu0 0
  %1113 = vmatpush1.bf16.msra.mxu0 0
  %1114 = vmatprep.subr.bf16.mxu0 0
  %1115 = vmatpush1.bf16.msra.mxu0 0
  %1116 = vmatprep.subr.bf16.mxu0 0
  %1117 = vmatpush1.bf16.msra.mxu0 0
  %1118 = vmatprep.subr.bf16.mxu0 0
  %1119 = vmatpush1.bf16.msra.mxu0 0
  %1120 = vmatprep.subr.bf16.mxu0 0
  %1121 = vmatpush1.bf16.msra.mxu0 0
  %1122 = vmatprep.subr.bf16.mxu0 0
  %1123 = vmatpush1.bf16.msra.mxu0 0
  %1124 = vmatprep.subr.bf16.mxu0 0
  %1125 = vmatpush1.bf16.msra.mxu0 0
  %1126 = vmatprep.subr.bf16.mxu0 0
  %1127 = vmatpush1.bf16.msra.mxu0 0
  %1128 = vmatprep.subr.bf16.mxu0 0
  %1129 = vmatpush1.bf16.msra.mxu0 0
  %1130 = vmatprep.subr.bf16.mxu0 0
  %1131 = vmatpush1.bf16.msra.mxu0 0
  %1132 = vmatprep.subr.bf16.mxu0 0
  %1133 = vmatpush1.bf16.msra.mxu0 0
  %1134 = vmatprep.mubr.bf16.mxu0 0
  %1135 = vmatmul.mubr.bf16.gmra.mrb[0].mxu0 %v1100
  %v1136 = vpop.f32.mrb[0].mxu0
  %v1137 = vadd.f32 %v1085, %v1136
  %v1138 = vpop.f32.mrb[0].mxu0
  %v1139 = vpop.f32.mrb[0].mxu0
  %v1140 = vadd.f32 %v1086, %v1139
  %v1141 = vpop.f32.mrb[0].mxu0
  %1142 = vdwg.mxu0
  %1145 = vrot.lane.b32.xlu0 %v414, 32
  %v1146 = vpop.permute.xlu0 %1145
  %1147 = vrot.lane.b32.xlu0 %v417, 32
  %v1148 = vpop.permute.xlu0 %1147
  %1153 = vrot.lane.b32.xlu0 %v911, 96
  %v1154 = vpop.permute.xlu0 %1153
  %1155 = vrot.lane.b32.xlu0 %v912, 96
  %v1156 = vpop.permute.xlu0 %1155
  %1161 = vrot.lane.b32.xlu0 %v1013, 32
  %v1162 = vpop.permute.xlu0 %1161
  %1163 = vrot.lane.b32.xlu0 %v1014, 32
  %v1164 = vpop.permute.xlu0 %1163
  %v1167 = vsel %vm165, %v1137, %v1146
  %v1168 = vsel %vm165, %v1140, %v1148
  %v1169 = vsel %vm98, %v1167, %v1154
  %v1170 = vsel %vm98, %v1168, %v1156
  %v1171 = vsel %vm165, %v1154, %v1162
  %v1172 = vsel %vm165, %v1156, %v1164
  %1173 = vst [vmem:[%s13] sm:$0xff] %v1169
  %1174 = vst.msk [vmem:[%s13 + $0x8] sm:$0xff] %vm98, %v1171
  %1175 = vst [vmem:[%s13 + $0x10] sm:$0xff] %v1170
  %1176 = vst.msk [vmem:[%s13 + $0x18] sm:$0xff] %vm98, %v1172
  // Predicated region
  $region54: #{rel_att_xl_forward.1} parent=0 // pred_check
    _
  $region55: #{rel_att_xl_forward.1} parent=0 // pred_check_branch
    %1178 = sbr.rel (0) target = $region57
  $region56: #{rel_att_xl_forward.1} parent=0 // pred_region
    _
  $region57: #{rel_att_xl_forward.1} parent=0 // pred_fallthru
    _
  // Predicated region
  $region58: #{rel_att_xl_forward.1} parent=0 // pred_check
    _
  $region59: #{rel_att_xl_forward.1} parent=0 // pred_check_branch
    %1180 = sbr.rel (0) target = $region61
  $region60: #{rel_att_xl_forward.1} parent=0 // pred_region
    _
  $region61: #{rel_att_xl_forward.1} parent=0 // pred_fallthru
    _

</llo_original>
